<compile_context>
chip_gen: v5e
topology: v5e:2x2
jax: 0.10.0
libtpu: 0.0.40
codegen_flags: <defaults>
</compile_context>

<pallas_src>
import functools

import jax
import jax.numpy as jnp
from jax.experimental import pallas as pl
from jax.experimental.pallas import tpu as pltpu

EPS = 1e-8


# ---------------------------------------------------------------------------
# Small helpers
# ---------------------------------------------------------------------------

def _round_up(n, m):
    return -(-n // m) * m


@functools.lru_cache()
def _device_vmem_bytes():
    """Physical VMEM of the attached TPU; conservative fallback (v7x)."""
    try:
        return int(pltpu.get_tpu_info().vmem_capacity_bytes)
    except Exception:
        return 64 << 20


def _gln_folded(v, gamma, beta, inv_n):
    """Global layer norm over the whole (H, K) block with a folded affine.

    Single-pass stats (sum / sum-of-squares), scale/bias folded so the
    per-element work is one mul + one add.
    """
    s = jnp.sum(v)
    ss = jnp.sum(v * v)
    mean = s * inv_n
    # TODO(synk): E[x^2]-mean^2 is slightly less stable than the reference
    # two-pass variance; fine in f32 for activation-scale data.
    var = jnp.maximum(ss * inv_n - mean * mean, 0.0)
    scale = gamma * jax.lax.rsqrt(var + EPS)          # (H, 1)
    bias = beta - mean * scale                        # (H, 1)
    return v * scale + bias


def _depthwise_from_window(win_ref, dw, P, dil, width):
    """Depthwise conv taps as static slices of a zero-edged VMEM window."""
    acc = None
    for p in range(P):
        tap = dw[:, p:p + 1] * win_ref[:, p * dil:p * dil + width]
        acc = tap if acc is None else acc + tap
    return acc


# ---------------------------------------------------------------------------
# Fused path: one pallas_call, whole (C/H, K) block per batch element in VMEM
# ---------------------------------------------------------------------------

def _fused_kernel(x_ref, w1_ref, a1_ref, g1_ref, b1_ref,
                  dw_ref, a2_ref, g2_ref, b2_ref, w2_ref,
                  o_ref, win_ref, *, P, dil, pad, K):
    C, Kp = x_ref.shape                 # batch dim squeezed by the BlockSpec
    H = w1_ref.shape[0]
    inv_n = 1.0 / float(H * K)          # real (un-padded) length
    mm_dt = w1_ref.dtype                # bf16 (default) or f32

    x = x_ref[...]                      # (C, Kp) f32 residual, stays resident

    # Lane-validity mask, only materialised when K was padded up to 128.
    kmask = None
    if Kp != K:
        col = jax.lax.broadcasted_iota(jnp.int32, (1, Kp), 1)
        kmask = col < K

    # -- 1x1 conv (C -> H): (H, C) @ (C, Kp) on the MXU, K on the lane axis.
    h = jnp.dot(w1_ref[...], x.astype(mm_dt),
                preferred_element_type=jnp.float32)
    a1 = a1_ref[0, 0]                                   # SMEM scalar
    h = jnp.where(h >= 0.0, h, a1 * h)                  # PReLU
    h = _gln_folded(h, g1_ref[...], b1_ref[...], inv_n)
    if kmask is not None:
        h = jnp.where(kmask, h, 0.0)    # padded lanes must be zero for taps

    # -- depthwise conv via a zero-edged (H, Kp + 2*pad) VMEM window.
    if pad > 0:
        win_ref[:, :pad] = jnp.zeros((H, pad), jnp.float32)
        win_ref[:, pad + Kp:] = jnp.zeros((H, pad), jnp.float32)
    win_ref[:, pad:pad + Kp] = h
    acc = _depthwise_from_window(win_ref, dw_ref[...], P, dil, Kp)

    a2 = a2_ref[0, 0]
    acc = jnp.where(acc >= 0.0, acc, a2 * acc)          # PReLU
    if kmask is not None:
        acc = jnp.where(kmask, acc, 0.0)                # keep gLN2 stats exact
    acc = _gln_folded(acc, g2_ref[...], b2_ref[...], inv_n)

    # -- 1x1 conv (H -> C) + residual add, lane-dense store.
    y = jnp.dot(w2_ref[...], acc.astype(w2_ref.dtype),
                preferred_element_type=jnp.float32)
    o_ref[...] = (y + x).astype(o_ref.dtype)


def _temporal_block_fused(x, params, *, P, dilation, pad, matmul_dtype,
                          vmem_limit):
    B, C, K = x.shape
    H = params['conv1x1_w'].shape[0]
    Kp = _round_up(K, 128)                       # lane-dense stores
    x_p = jnp.pad(x, ((0, 0), (0, 0), (0, Kp - K))) if Kp != K else x

    w1 = params['conv1x1_w'].astype(matmul_dtype)
    w2 = params['pw_w'].astype(matmul_dtype)

    kern = functools.partial(_fused_kernel, P=P, dil=dilation, pad=pad, K=K)
    batch_blk = lambda b: (b, 0, 0)
    const2 = lambda b: (0, 0)
    smem_spec = pl.BlockSpec(memory_space=pltpu.MemorySpace.SMEM)

    out = pl.pallas_call(
        kern,
        out_shape=jax.ShapeDtypeStruct((B, C, Kp), x.dtype),
        grid=(B,),
        in_specs=[
            pl.BlockSpec((None, C, Kp), batch_blk),   # x (batch squeezed)
            pl.BlockSpec((H, C), const2),             # conv1x1 weight
            smem_spec,                                # PReLU alpha 1 (scalar)
            pl.BlockSpec((H, 1), const2),             # gLN1 gamma
            pl.BlockSpec((H, 1), const2),             # gLN1 beta
            pl.BlockSpec((H, P), const2),             # depthwise weight
            smem_spec,                                # PReLU alpha 2 (scalar)
            pl.BlockSpec((H, 1), const2),             # gLN2 gamma
            pl.BlockSpec((H, 1), const2),             # gLN2 beta
            pl.BlockSpec((C, H), const2),             # pointwise weight
        ],
        out_specs=pl.BlockSpec((None, C, Kp), batch_blk),
        scratch_shapes=[pltpu.VMEM((H, Kp + 2 * pad), jnp.float32)],
        compiler_params=pltpu.CompilerParams(
            dimension_semantics=("parallel",),
            vmem_limit_bytes=vmem_limit),
    )(x_p, w1, params['prelu1'], params['gln1_g'], params['gln1_b'],
      params['dw_w'], params['prelu2'], params['gln2_g'], params['gln2_b'],
      w2)
    return out[:, :, :K] if Kp != K else out


# ---------------------------------------------------------------------------
# K-tiled path: 3 pallas_calls split at the gLN boundaries, grid = (B, NK)
# ---------------------------------------------------------------------------

def _stage1_kernel(x_ref, w1_ref, a1_ref, h_ref, st_ref):
    """1x1 conv (C->H) + PReLU per K-tile; accumulate gLN1 sum / sum-sq."""
    @pl.when(pl.program_id(1) == 0)
    def _():
        st_ref[...] = jnp.zeros_like(st_ref)

    h = jnp.dot(w1_ref[...], x_ref[...].astype(w1_ref.dtype),
                preferred_element_type=jnp.float32)
    a1 = a1_ref[0, 0]
    h = jnp.where(h >= 0.0, h, a1 * h)
    h_ref[...] = h
    st_ref[:, 0:1] += jnp.sum(h, axis=1, keepdims=True)
    st_ref[:, 1:2] += jnp.sum(h * h, axis=1, keepdims=True)


def _stage2_kernel(hm_ref, hl_ref, hr_ref, s1_ref, b1_ref, dw_ref, a2_ref,
                   d_ref, st_ref, win_ref, *, P, dil, pad, TK, K):
    """gLN1 apply + depthwise conv (haloed) + PReLU; accumulate gLN2 stats."""
    kt = pl.program_id(1)

    @pl.when(kt == 0)
    def _():
        st_ref[...] = jnp.zeros_like(st_ref)

    HALO = hl_ref.shape[1]
    # Assemble the haloed window covering global columns [kt*TK-pad, kt*TK+TK+pad).
    if pad > 0:
        win_ref[:, :pad] = hl_ref[:, HALO - pad:]
        win_ref[:, pad + TK:] = hr_ref[:, :pad]
    win_ref[:, pad:pad + TK] = hm_ref[...]

    # gLN1 affine (scale/bias precomputed per batch) + zero outside [0, K).
    col = jax.lax.broadcasted_iota(jnp.int32, (1, TK + 2 * pad), 1)
    gcol = kt * TK - pad + col
    valid = jnp.logical_and(gcol >= 0, gcol < K)
    win_ref[...] = jnp.where(valid,
                             win_ref[...] * s1_ref[...] + b1_ref[...], 0.0)

    acc = _depthwise_from_window(win_ref, dw_ref[...], P, dil, TK)
    a2 = a2_ref[0, 0]
    acc = jnp.where(acc >= 0.0, acc, a2 * acc)
    dvalid = (kt * TK + jax.lax.broadcasted_iota(jnp.int32, (1, TK), 1)) < K
    acc = jnp.where(dvalid, acc, 0.0)                    # keep stats exact
    d_ref[...] = acc
    st_ref[:, 0:1] += jnp.sum(acc, axis=1, keepdims=True)
    st_ref[:, 1:2] += jnp.sum(acc * acc, axis=1, keepdims=True)


def _stage3_kernel(d_ref, s2_ref, b2_ref, w2_ref, x_ref, o_ref):
    """gLN2 apply + 1x1 conv (H->C) + residual add per K-tile."""
    a = d_ref[...] * s2_ref[...] + b2_ref[...]
    y = jnp.dot(w2_ref[...], a.astype(w2_ref.dtype),
                preferred_element_type=jnp.float32)
    o_ref[...] = (y + x_ref[...]).astype(o_ref.dtype)


def _fold_gln_stats(st, gamma, beta, n):
    """(B,H,2) partial sums -> per-batch folded gLN scale/bias of shape (B,H,1)."""
    s = jnp.sum(st[:, :, 0], axis=1)                     # (B,)
    ss = jnp.sum(st[:, :, 1], axis=1)
    mean = s / n
    var = jnp.maximum(ss / n - mean * mean, 0.0)
    scale = gamma[None] * jax.lax.rsqrt(var + EPS)[:, None, None]   # (B,H,1)
    bias = beta[None] - mean[:, None, None] * scale
    return scale, bias


def _temporal_block_tiled(x, params, *, P, dilation, pad, matmul_dtype,
                          k_tile, vmem_limit):
    B, C, K = x.shape
    H = params['conv1x1_w'].shape[0]
    f32 = jnp.float32

    HALO = max(128, _round_up(max(pad, 1), 128))         # halo block (lane unit)
    TK = max(HALO, _round_up(k_tile, HALO))              # K-tile width
    NK = -(-K // TK)
    Kp = NK * TK
    R = TK // HALO

    x_p = jnp.pad(x, ((0, 0), (0, 0), (0, Kp - K))) if Kp != K else x
    w1 = params['conv1x1_w'].astype(matmul_dtype)
    w2 = params['pw_w'].astype(matmul_dtype)
    smem_spec = pl.BlockSpec(memory_space=pltpu.MemorySpace.SMEM)

    def cparams(sem):
        return pltpu.CompilerParams(dimension_semantics=sem,
                                    vmem_limit_bytes=vmem_limit)

    # ---- stage 1: 1x1 conv + PReLU, write h; accumulate gLN1 stats per batch.
    h, st1 = pl.pallas_call(
        _stage1_kernel,
        out_shape=(jax.ShapeDtypeStruct((B, H, Kp), f32),
                   jax.ShapeDtypeStruct((B, H, 2), f32)),
        grid=(B, NK),
        in_specs=[
            pl.BlockSpec((None, C, TK), lambda b, k: (b, 0, k)),
            pl.BlockSpec((H, C), lambda b, k: (0, 0)),
            smem_spec,
        ],
        out_specs=(pl.BlockSpec((None, H, TK), lambda b, k: (b, 0, k)),
                   pl.BlockSpec((None, H, 2), lambda b, k: (b, 0, 0))),
        compiler_params=cparams(("parallel", "arbitrary")),
    )(x_p, w1, params['prelu1'])

    scale1, bias1 = _fold_gln_stats(st1, params['gln1_g'], params['gln1_b'],
                                    H * K)

    # ---- stage 2: gLN1 apply + depthwise conv with halo + PReLU; gLN2 stats.
    kern2 = functools.partial(_stage2_kernel, P=P, dil=dilation, pad=pad,
                              TK=TK, K=K)
    d, st2 = pl.pallas_call(
        kern2,
        out_shape=(jax.ShapeDtypeStruct((B, H, Kp), f32),
                   jax.ShapeDtypeStruct((B, H, 2), f32)),
        grid=(B, NK),
        in_specs=[
            pl.BlockSpec((None, H, TK), lambda b, k: (b, 0, k)),
            # Left/right halo blocks: clamped index maps; anything fetched from
            # the wrong side of the array is zeroed by the in-kernel validity
            # mask, so no padded copy of h is needed in HBM.
            pl.BlockSpec((None, H, HALO),
                         lambda b, k: (b, 0, jnp.maximum(k * R - 1, 0))),
            pl.BlockSpec((None, H, HALO),
                         lambda b, k: (b, 0, jnp.minimum((k + 1) * R,
                                                         NK * R - 1))),
            pl.BlockSpec((None, H, 1), lambda b, k: (b, 0, 0)),   # gLN1 scale
            pl.BlockSpec((None, H, 1), lambda b, k: (b, 0, 0)),   # gLN1 bias
            pl.BlockSpec((H, P), lambda b, k: (0, 0)),            # dw weight
            smem_spec,                                            # alpha 2
        ],
        out_specs=(pl.BlockSpec((None, H, TK), lambda b, k: (b, 0, k)),
                   pl.BlockSpec((None, H, 2), lambda b, k: (b, 0, 0))),
        scratch_shapes=[pltpu.VMEM((H, TK + 2 * pad), f32)],
        compiler_params=cparams(("parallel", "arbitrary")),
    )(h, h, h, scale1, bias1, params['dw_w'], params['prelu2'])

    scale2, bias2 = _fold_gln_stats(st2, params['gln2_g'], params['gln2_b'],
                                    H * K)

    # ---- stage 3: gLN2 apply + 1x1 conv (H->C) + residual.
    out = pl.pallas_call(
        _stage3_kernel,
        out_shape=jax.ShapeDtypeStruct((B, C, Kp), x.dtype),
        grid=(B, NK),
        in_specs=[
            pl.BlockSpec((None, H, TK), lambda b, k: (b, 0, k)),
            pl.BlockSpec((None, H, 1), lambda b, k: (b, 0, 0)),
            pl.BlockSpec((None, H, 1), lambda b, k: (b, 0, 0)),
            pl.BlockSpec((C, H), lambda b, k: (0, 0)),
            pl.BlockSpec((None, C, TK), lambda b, k: (b, 0, k)),
        ],
        out_specs=pl.BlockSpec((None, C, TK), lambda b, k: (b, 0, k)),
        compiler_params=cparams(("parallel", "parallel")),
    )(d, scale2, bias2, w2, x_p)
    return out[:, :, :K] if Kp != K else out


# ---------------------------------------------------------------------------
# Public entry point: fused when the per-batch block fits VMEM, tiled otherwise
# ---------------------------------------------------------------------------

def temporal_block(x, params, *, kernel_size=3, stride=1, dilation=1,
                   matmul_dtype=jnp.bfloat16, k_tile=512, force_path=None):
    """TemporalBlock forward. x: (B, C, K) channels-first float32."""
    if stride != 1:
        # TODO(synk): stride != 1 also breaks the residual add in the original
        # PyTorch module; only stride=1 (the Conv-TasNet config) is supported.
        raise NotImplementedError("only stride=1 is supported")
    B, C, K = x.shape
    H, Cw = params['conv1x1_w'].shape
    P = kernel_size
    assert Cw == C and params['pw_w'].shape == (C, H)
    assert params['dw_w'].shape == (H, P)
    assert (P - 1) * dilation % 2 == 0, \
        "same-length output needs even (P-1)*dilation"
    pad = (P - 1) * dilation // 2

    # Generation-aware VMEM budget (v5e/v6e: 128 MiB, v7x: 64 MiB per core).
    budget = max(_device_vmem_bytes() - (16 << 20), 16 << 20)

    # Fused-path VMEM estimate (f32 unless noted):
    #   x/out blocks double-buffered + window scratch + live (H,Kp) temps
    #   + bf16 matmul-operand casts + (double-buffered) weights.
    mm_b = jnp.dtype(matmul_dtype).itemsize
    Kp_f = _round_up(K, 128)
    est_f = (4 * 4 * C * Kp_f
             + 4 * H * (Kp_f + 2 * pad)
             + 3 * 4 * H * Kp_f
             + mm_b * (H + C) * Kp_f
             + 2 * (2 * mm_b * H * C + 4 * (H * P + 4 * H + 2)))

    use_tiled = (force_path == "tiled" or
                 (force_path != "fused" and est_f > int(0.9 * budget)))
    if use_tiled:
        return _temporal_block_tiled(
            x, params, P=P, dilation=dilation, pad=pad,
            matmul_dtype=matmul_dtype, k_tile=k_tile,
            vmem_limit=int(min(64 << 20, budget)))
    vmem_limit = int(min(max(int(est_f * 1.25) + (4 << 20), 16 << 20), budget))
    return _temporal_block_fused(
        x, params, P=P, dilation=dilation, pad=pad,
        matmul_dtype=matmul_dtype, vmem_limit=vmem_limit)


# ---------------------------------------------------------------------------
# Pure-JAX reference (PyTorch TemporalBlock semantics) and parameter init
# ---------------------------------------------------------------------------

def temporal_block_ref(x, params, *, kernel_size=3, dilation=1):
    P = kernel_size
    pad = (P - 1) * dilation // 2
    K = x.shape[-1]
    hi = jax.lax.Precision.HIGHEST

    def gln(v, g, b):
        mean = jnp.mean(v, axis=(1, 2), keepdims=True)
        var = jnp.mean((v - mean) ** 2, axis=(1, 2), keepdims=True)
        return g[None] * (v - mean) / jnp.sqrt(var + EPS) + b[None]

    def prelu(v, a):
        return jnp.where(v >= 0, v, a * v)

    h = jnp.einsum('hc,bck->bhk', params['conv1x1_w'], x, precision=hi)
    h = prelu(h, params['prelu1'][0, 0])
    h = gln(h, params['gln1_g'], params['gln1_b'])

    hp = jnp.pad(h, ((0, 0), (0, 0), (pad, pad)))
    acc = 0.0
    for p in range(P):
        acc = acc + params['dw_w'][None, :, p:p + 1] * \
            hp[:, :, p * dilation: p * dilation + K]
    acc = prelu(acc, params['prelu2'][0, 0])
    acc = gln(acc, params['gln2_g'], params['gln2_b'])

    y = jnp.einsum('ch,bhk->bck', params['pw_w'], acc, precision=hi)
    return y + x


def init_temporal_block_params(key, in_channels, hidden_channels, kernel_size,
                               scale=0.1):
    C, H, P = in_channels, hidden_channels, kernel_size
    k1, k2, k3 = jax.random.split(key, 3)
    f32 = jnp.float32
    return dict(
        conv1x1_w=(scale * jax.random.normal(k1, (H, C))).astype(f32),
        prelu1=jnp.full((1, 1), 0.25, f32),
        gln1_g=jnp.ones((H, 1), f32), gln1_b=jnp.zeros((H, 1), f32),
        dw_w=(scale * jax.random.normal(k2, (H, P))).astype(f32),
        prelu2=jnp.full((1, 1), 0.25, f32),
        gln2_g=jnp.ones((H, 1), f32), gln2_b=jnp.zeros((H, 1), f32),
        pw_w=(scale * jax.random.normal(k3, (C, H))).astype(f32),
    )


# ---------------------------------------------------------------------------
# Main
# ---------------------------------------------------------------------------

if __name__ == "__main__":
    # Small config consistent with the module (orig Conv-TasNet: in=256,
    # hidden=512, P=3, K ~ 3000).  K=256 is lane-aligned; K=200 exercises the
    # lane-padding / mask path and the ragged last K-tile of the tiled path.
    Batch, C_in, Hid, P = 2, 16, 32, 3

    key = jax.random.PRNGKey(0)
    kx, k1, k2, k3 = jax.random.split(key, 4)
    dilations = (1, 2, 4)                      # TCN-style stack of blocks
    block_params = [init_temporal_block_params(k, C_in, Hid, P)
                    for k in (k1, k2, k3)]

    def run_chain(x0, fn, **kw):
        out = x0
        for prm, d in zip(block_params, dilations):
            out = fn(out, prm, kernel_size=P, dilation=d, **kw)
        return out

    cases = [
        dict(matmul_dtype=jnp.float32, force_path="fused"),     # debug path
        dict(matmul_dtype=jnp.bfloat16, force_path="fused"),    # default
        dict(matmul_dtype=jnp.bfloat16, force_path="tiled", k_tile=128),
    ]

    for K_test in (256, 200):
        x = jax.random.normal(kx, (Batch, C_in, K_test), dtype=jnp.float32)
        ref = run_chain(x, temporal_block_ref)
        for cfg in cases:
            out = jax.block_until_ready(run_chain(x, temporal_block, **cfg))
            assert out.shape == x.shape and out.dtype == x.dtype
            rel = float(jnp.linalg.norm(out - ref) / jnp.linalg.norm(ref))
            tol = 3e-3 if cfg["matmul_dtype"] == jnp.float32 else 3e-2
            assert rel < tol, f"relative error {rel} too high for {cfg}, K={K_test}"

    print("KERNEL_OK")
</pallas_src>

<mosaic_0001>
module attributes {stable_mosaic.version = 11 : i64} {
  func.func @_fused_kernel(%arg0: i32, %arg1: memref<1x16x256xf32, #tpu.memory_space<vmem>>, %arg2: memref<32x16xf32, #tpu.memory_space<vmem>>, %arg3: memref<1x1xf32, #tpu.memory_space<smem>>, %arg4: memref<32x1xf32, #tpu.memory_space<vmem>>, %arg5: memref<32x1xf32, #tpu.memory_space<vmem>>, %arg6: memref<32x3xf32, #tpu.memory_space<vmem>>, %arg7: memref<1x1xf32, #tpu.memory_space<smem>>, %arg8: memref<32x1xf32, #tpu.memory_space<vmem>>, %arg9: memref<32x1xf32, #tpu.memory_space<vmem>>, %arg10: memref<16x32xf32, #tpu.memory_space<vmem>>, %arg11: memref<1x16x256xf32, #tpu.memory_space<vmem>>, %arg12: memref<32x258xf32, #tpu.memory_space<vmem>>) attributes {dimension_semantics = [#tpu.dimension_semantics<parallel>], iteration_bounds = array<i64: 2>, scalar_prefetch = 0 : i64, scratch_operands = 1 : i64, tpu.core_type = #tpu.core_type<tc>, window_params = [{transform_indices = @transform_0, window_bounds = array<i64: 1, 16, 256>}, {pipeline_mode = #tpu.pipeline_mode<synchronous>, transform_indices = @transform_1, window_bounds = array<i64: 32, 16>}, {transform_indices = @transform_2, window_bounds = array<i64: 1, 1>}, {pipeline_mode = #tpu.pipeline_mode<synchronous>, transform_indices = @transform_3, window_bounds = array<i64: 32, 1>}, {pipeline_mode = #tpu.pipeline_mode<synchronous>, transform_indices = @transform_4, window_bounds = array<i64: 32, 1>}, {pipeline_mode = #tpu.pipeline_mode<synchronous>, transform_indices = @transform_5, window_bounds = array<i64: 32, 3>}, {transform_indices = @transform_6, window_bounds = array<i64: 1, 1>}, {pipeline_mode = #tpu.pipeline_mode<synchronous>, transform_indices = @transform_7, window_bounds = array<i64: 32, 1>}, {pipeline_mode = #tpu.pipeline_mode<synchronous>, transform_indices = @transform_8, window_bounds = array<i64: 32, 1>}, {pipeline_mode = #tpu.pipeline_mode<synchronous>, transform_indices = @transform_9, window_bounds = array<i64: 16, 32>}, {transform_indices = @transform_10, window_bounds = array<i64: 1, 16, 256>}]} {
    %c0 = arith.constant 0 : index
    %c0_0 = arith.constant 0 : index
    %c0_1 = arith.constant 0 : index
    %0 = vector.load %arg1[%c0, %c0_0, %c0_1] : memref<1x16x256xf32, #tpu.memory_space<vmem>>, vector<1x16x256xf32>
    %1 = vector.shape_cast %0 : vector<1x16x256xf32> to vector<16x256xf32>
    %c0_2 = arith.constant 0 : index
    %c0_3 = arith.constant 0 : index
    %2 = vector.load %arg2[%c0_2, %c0_3] : memref<32x16xf32, #tpu.memory_space<vmem>>, vector<32x16xf32>
    %cst = arith.constant dense<0.000000e+00> : vector<32x256xf32>
    %3 = tpu.matmul %2, %1, %cst {dimension_numbers = #tpu.dot_dimension_numbers<[1], [0], [0], [1], [0, 0, 1, 1], [], []>} : vector<32x16xf32>, vector<16x256xf32>, vector<32x256xf32> -> vector<32x256xf32>
    %c0_4 = arith.constant 0 : index
    %c0_5 = arith.constant 0 : index
    %4 = memref.load %arg3[%c0_4, %c0_5] : memref<1x1xf32, #tpu.memory_space<smem>>
    %cst_6 = arith.constant 0.000000e+00 : f32
    %5 = vector.broadcast %cst_6 : f32 to vector<32x256xf32>
    %6 = arith.cmpf oge, %3, %5 : vector<32x256xf32>
    %7 = vector.broadcast %4 : f32 to vector<32x256xf32>
    %8 = arith.mulf %7, %3 : vector<32x256xf32>
    %9 = arith.select %6, %3, %8 : vector<32x256xi1>, vector<32x256xf32>
    %c0_7 = arith.constant 0 : index
    %c0_8 = arith.constant 0 : index
    %10 = vector.load %arg4[%c0_7, %c0_8] : memref<32x1xf32, #tpu.memory_space<vmem>>, vector<32x1xf32>
    %c0_9 = arith.constant 0 : index
    %c0_10 = arith.constant 0 : index
    %11 = vector.load %arg5[%c0_9, %c0_10] : memref<32x1xf32, #tpu.memory_space<vmem>>, vector<32x1xf32>
    %12 = vector.shape_cast %9 : vector<32x256xf32> to vector<1x32x256xf32>
    %cst_11 = arith.constant dense<0.000000e+00> : vector<1xf32>
    %13 = vector.multi_reduction <add>, %12, %cst_11 [1, 2] : vector<1x32x256xf32> to vector<1xf32>
    %14 = vector.shape_cast %13 : vector<1xf32> to vector<1x1x1xf32>
    %15 = vector.extract %14[0, 0, 0] : f32 from vector<1x1x1xf32>
    %16 = arith.mulf %9, %9 : vector<32x256xf32>
    %17 = vector.shape_cast %16 : vector<32x256xf32> to vector<1x32x256xf32>
    %cst_12 = arith.constant dense<0.000000e+00> : vector<1xf32>
    %18 = vector.multi_reduction <add>, %17, %cst_12 [1, 2] : vector<1x32x256xf32> to vector<1xf32>
    %19 = vector.shape_cast %18 : vector<1xf32> to vector<1x1x1xf32>
    %20 = vector.extract %19[0, 0, 0] : f32 from vector<1x1x1xf32>
    %cst_13 = arith.constant 1.22070313E-4 : f32
    %21 = arith.mulf %15, %cst_13 : f32
    %cst_14 = arith.constant 1.22070313E-4 : f32
    %22 = arith.mulf %20, %cst_14 : f32
    %23 = arith.mulf %21, %21 : f32
    %24 = arith.subf %22, %23 : f32
    %cst_15 = arith.constant 0.000000e+00 : f32
    %25 = arith.maximumf %24, %cst_15 : f32
    %cst_16 = arith.constant 9.99999993E-9 : f32
    %26 = arith.addf %25, %cst_16 : f32
    %27 = math.rsqrt %26 : f32
    %28 = vector.broadcast %27 : f32 to vector<32x1xf32>
    %29 = arith.mulf %10, %28 : vector<32x1xf32>
    %30 = vector.broadcast %21 : f32 to vector<32x1xf32>
    %31 = arith.mulf %30, %29 : vector<32x1xf32>
    %32 = arith.subf %11, %31 : vector<32x1xf32>
    %33 = vector.broadcast %29 : vector<32x1xf32> to vector<32x256xf32>
    %34 = arith.mulf %9, %33 : vector<32x256xf32>
    %35 = vector.broadcast %32 : vector<32x1xf32> to vector<32x256xf32>
    %36 = arith.addf %34, %35 : vector<32x256xf32>
    %cst_17 = arith.constant 0.000000e+00 : f32
    %37 = vector.broadcast %cst_17 : f32 to vector<32x1xf32>
    %c0_18 = arith.constant 0 : index
    %c0_19 = arith.constant 0 : index
    %38 = vector.load %arg12[%c0_18, %c0_19] : memref<32x258xf32, #tpu.memory_space<vmem>>, vector<32x1xf32>
    tpu.vector_store %arg12[%c0_18, %c0_19], %37 {strides = array<i32>} : memref<32x258xf32, #tpu.memory_space<vmem>>, vector<32x1xf32>,
    %cst_20 = arith.constant 0.000000e+00 : f32
    %39 = vector.broadcast %cst_20 : f32 to vector<32x1xf32>
    %c0_21 = arith.constant 0 : index
    %c257 = arith.constant 257 : index
    %40 = vector.load %arg12[%c0_21, %c257] : memref<32x258xf32, #tpu.memory_space<vmem>>, vector<32x1xf32>
    tpu.vector_store %arg12[%c0_21, %c257], %39 {strides = array<i32>} : memref<32x258xf32, #tpu.memory_space<vmem>>, vector<32x1xf32>,
    %c0_22 = arith.constant 0 : index
    %c1 = arith.constant 1 : index
    %41 = vector.load %arg12[%c0_22, %c1] : memref<32x258xf32, #tpu.memory_space<vmem>>, vector<32x256xf32>
    tpu.vector_store %arg12[%c0_22, %c1], %36 {strides = array<i32>} : memref<32x258xf32, #tpu.memory_space<vmem>>, vector<32x256xf32>,
    %c0_23 = arith.constant 0 : index
    %c0_24 = arith.constant 0 : index
    %42 = vector.load %arg6[%c0_23, %c0_24] : memref<32x3xf32, #tpu.memory_space<vmem>>, vector<32x3xf32>
    %43 = vector.extract_strided_slice %42 {offsets = [0, 0], sizes = [32, 1], strides = [1, 1]} : vector<32x3xf32> to vector<32x1xf32>
    %c0_25 = arith.constant 0 : index
    %c0_26 = arith.constant 0 : index
    %44 = vector.load %arg12[%c0_25, %c0_26] : memref<32x258xf32, #tpu.memory_space<vmem>>, vector<32x256xf32>
    %45 = vector.broadcast %43 : vector<32x1xf32> to vector<32x256xf32>
    %46 = arith.mulf %45, %44 : vector<32x256xf32>
    %47 = vector.extract_strided_slice %42 {offsets = [0, 1], sizes = [32, 1], strides = [1, 1]} : vector<32x3xf32> to vector<32x1xf32>
    %c0_27 = arith.constant 0 : index
    %c1_28 = arith.constant 1 : index
    %48 = vector.load %arg12[%c0_27, %c1_28] : memref<32x258xf32, #tpu.memory_space<vmem>>, vector<32x256xf32>
    %49 = vector.broadcast %47 : vector<32x1xf32> to vector<32x256xf32>
    %50 = arith.mulf %49, %48 : vector<32x256xf32>
    %51 = arith.addf %46, %50 : vector<32x256xf32>
    %52 = vector.extract_strided_slice %42 {offsets = [0, 2], sizes = [32, 1], strides = [1, 1]} : vector<32x3xf32> to vector<32x1xf32>
    %c0_29 = arith.constant 0 : index
    %c2 = arith.constant 2 : index
    %53 = vector.load %arg12[%c0_29, %c2] : memref<32x258xf32, #tpu.memory_space<vmem>>, vector<32x256xf32>
    %54 = vector.broadcast %52 : vector<32x1xf32> to vector<32x256xf32>
    %55 = arith.mulf %54, %53 : vector<32x256xf32>
    %56 = arith.addf %51, %55 : vector<32x256xf32>
    %c0_30 = arith.constant 0 : index
    %c0_31 = arith.constant 0 : index
    %57 = memref.load %arg7[%c0_30, %c0_31] : memref<1x1xf32, #tpu.memory_space<smem>>
    %cst_32 = arith.constant 0.000000e+00 : f32
    %58 = vector.broadcast %cst_32 : f32 to vector<32x256xf32>
    %59 = arith.cmpf oge, %56, %58 : vector<32x256xf32>
    %60 = vector.broadcast %57 : f32 to vector<32x256xf32>
    %61 = arith.mulf %60, %56 : vector<32x256xf32>
    %62 = arith.select %59, %56, %61 : vector<32x256xi1>, vector<32x256xf32>
    %c0_33 = arith.constant 0 : index
    %c0_34 = arith.constant 0 : index
    %63 = vector.load %arg8[%c0_33, %c0_34] : memref<32x1xf32, #tpu.memory_space<vmem>>, vector<32x1xf32>
    %c0_35 = arith.constant 0 : index
    %c0_36 = arith.constant 0 : index
    %64 = vector.load %arg9[%c0_35, %c0_36] : memref<32x1xf32, #tpu.memory_space<vmem>>, vector<32x1xf32>
    %65 = vector.shape_cast %62 : vector<32x256xf32> to vector<1x32x256xf32>
    %cst_37 = arith.constant dense<0.000000e+00> : vector<1xf32>
    %66 = vector.multi_reduction <add>, %65, %cst_37 [1, 2] : vector<1x32x256xf32> to vector<1xf32>
    %67 = vector.shape_cast %66 : vector<1xf32> to vector<1x1x1xf32>
    %68 = vector.extract %67[0, 0, 0] : f32 from vector<1x1x1xf32>
    %69 = arith.mulf %62, %62 : vector<32x256xf32>
    %70 = vector.shape_cast %69 : vector<32x256xf32> to vector<1x32x256xf32>
    %cst_38 = arith.constant dense<0.000000e+00> : vector<1xf32>
    %71 = vector.multi_reduction <add>, %70, %cst_38 [1, 2] : vector<1x32x256xf32> to vector<1xf32>
    %72 = vector.shape_cast %71 : vector<1xf32> to vector<1x1x1xf32>
    %73 = vector.extract %72[0, 0, 0] : f32 from vector<1x1x1xf32>
    %cst_39 = arith.constant 1.22070313E-4 : f32
    %74 = arith.mulf %68, %cst_39 : f32
    %cst_40 = arith.constant 1.22070313E-4 : f32
    %75 = arith.mulf %73, %cst_40 : f32
    %76 = arith.mulf %74, %74 : f32
    %77 = arith.subf %75, %76 : f32
    %cst_41 = arith.constant 0.000000e+00 : f32
    %78 = arith.maximumf %77, %cst_41 : f32
    %cst_42 = arith.constant 9.99999993E-9 : f32
    %79 = arith.addf %78, %cst_42 : f32
    %80 = math.rsqrt %79 : f32
    %81 = vector.broadcast %80 : f32 to vector<32x1xf32>
    %82 = arith.mulf %63, %81 : vector<32x1xf32>
    %83 = vector.broadcast %74 : f32 to vector<32x1xf32>
    %84 = arith.mulf %83, %82 : vector<32x1xf32>
    %85 = arith.subf %64, %84 : vector<32x1xf32>
    %86 = vector.broadcast %82 : vector<32x1xf32> to vector<32x256xf32>
    %87 = arith.mulf %62, %86 : vector<32x256xf32>
    %88 = vector.broadcast %85 : vector<32x1xf32> to vector<32x256xf32>
    %89 = arith.addf %87, %88 : vector<32x256xf32>
    %c0_43 = arith.constant 0 : index
    %c0_44 = arith.constant 0 : index
    %90 = vector.load %arg10[%c0_43, %c0_44] : memref<16x32xf32, #tpu.memory_space<vmem>>, vector<16x32xf32>
    %cst_45 = arith.constant dense<0.000000e+00> : vector<16x256xf32>
    %91 = tpu.matmul %90, %89, %cst_45 {dimension_numbers = #tpu.dot_dimension_numbers<[1], [0], [0], [1], [0, 0, 1, 1], [], []>} : vector<16x32xf32>, vector<32x256xf32>, vector<16x256xf32> -> vector<16x256xf32>
    %92 = arith.addf %91, %1 : vector<16x256xf32>
    %c0_46 = arith.constant 0 : index
    %c0_47 = arith.constant 0 : index
    %c0_48 = arith.constant 0 : index
    %93 = vector.load %arg11[%c0_46, %c0_47, %c0_48] : memref<1x16x256xf32, #tpu.memory_space<vmem>>, vector<1x16x256xf32>
    %94 = vector.shape_cast %93 : vector<1x16x256xf32> to vector<16x256xf32>
    %95 = vector.shape_cast %92 : vector<16x256xf32> to vector<1x16x256xf32>
    tpu.vector_store %arg11[%c0_46, %c0_47, %c0_48], %95 {strides = array<i32>} : memref<1x16x256xf32, #tpu.memory_space<vmem>>, vector<1x16x256xf32>,
    return
  }
  func.func @transform_0(%arg0: i32) -> (i32, i32, i32) {
    %c0_i32 = arith.constant 0 : i32
    %c0_i32_0 = arith.constant 0 : i32
    %c0_i32_1 = arith.constant 0 : i32
    return %arg0, %c0_i32, %c0_i32_0 : i32, i32, i32
  }
  func.func @transform_1(%arg0: i32) -> (i32, i32) {
    %c0_i32 = arith.constant 0 : i32
    %c0_i32_0 = arith.constant 0 : i32
    %c0_i32_1 = arith.constant 0 : i32
    return %c0_i32, %c0_i32_0 : i32, i32
  }
  func.func @transform_2(%arg0: i32) -> (i32, i32) {
    %c0_i32 = arith.constant 0 : i32
    %c0_i32_0 = arith.constant 0 : i32
    %c0_i32_1 = arith.constant 0 : i32
    return %c0_i32, %c0_i32_0 : i32, i32
  }
  func.func @transform_3(%arg0: i32) -> (i32, i32) {
    %c0_i32 = arith.constant 0 : i32
    %c0_i32_0 = arith.constant 0 : i32
    %c0_i32_1 = arith.constant 0 : i32
    return %c0_i32, %c0_i32_0 : i32, i32
  }
  func.func @transform_4(%arg0: i32) -> (i32, i32) {
    %c0_i32 = arith.constant 0 : i32
    %c0_i32_0 = arith.constant 0 : i32
    %c0_i32_1 = arith.constant 0 : i32
    return %c0_i32, %c0_i32_0 : i32, i32
  }
  func.func @transform_5(%arg0: i32) -> (i32, i32) {
    %c0_i32 = arith.constant 0 : i32
    %c0_i32_0 = arith.constant 0 : i32
    %c0_i32_1 = arith.constant 0 : i32
    return %c0_i32, %c0_i32_0 : i32, i32
  }
  func.func @transform_6(%arg0: i32) -> (i32, i32) {
    %c0_i32 = arith.constant 0 : i32
    %c0_i32_0 = arith.constant 0 : i32
    %c0_i32_1 = arith.constant 0 : i32
    return %c0_i32, %c0_i32_0 : i32, i32
  }
  func.func @transform_7(%arg0: i32) -> (i32, i32) {
    %c0_i32 = arith.constant 0 : i32
    %c0_i32_0 = arith.constant 0 : i32
    %c0_i32_1 = arith.constant 0 : i32
    return %c0_i32, %c0_i32_0 : i32, i32
  }
  func.func @transform_8(%arg0: i32) -> (i32, i32) {
    %c0_i32 = arith.constant 0 : i32
    %c0_i32_0 = arith.constant 0 : i32
    %c0_i32_1 = arith.constant 0 : i32
    return %c0_i32, %c0_i32_0 : i32, i32
  }
  func.func @transform_9(%arg0: i32) -> (i32, i32) {
    %c0_i32 = arith.constant 0 : i32
    %c0_i32_0 = arith.constant 0 : i32
    %c0_i32_1 = arith.constant 0 : i32
    return %c0_i32, %c0_i32_0 : i32, i32
  }
  func.func @transform_10(%arg0: i32) -> (i32, i32, i32) {
    %c0_i32 = arith.constant 0 : i32
    %c0_i32_0 = arith.constant 0 : i32
    %c0_i32_1 = arith.constant 0 : i32
    return %arg0, %c0_i32, %c0_i32_0 : i32, i32, i32
  }
}

</mosaic_0001>

<llo_original>
// kernel: tpu_custom_call.1
$region0: #{tpu_custom_call.1}
  #allocation0 [shape = 'u32[]', space=smem, size = 0x4, offset = 0x4, fixed_abs, tag = 'smem constant byte address 0x4 - core index']
  #allocation1 [shape = 'u32[72,128]{1,0:T(1,128)}', space=vmem, size = 0x9000, scoped, tag = 'internal scratch']
  #allocation2 [shape = 'f32[32,258]{1,0:T(8,128)}', space=vmem, size = 0xc000, scoped, tag = 'scratch operand']
  #allocation3 [shape = 'f32[1,1]{1,0:T(1,128)S(6)}', space=smem, size = 0x200, scoped, tag = 'scoped memory for tpu_custom_call.1']
  #allocation4 [shape = 'f32[1,1]{1,0:T(1,128)S(6)}', space=smem, size = 0x200, scoped, tag = 'scoped memory for tpu_custom_call.1']
  %s0 = inlined_call_operand.vmem [shape: f32[2,16,256], index: 0, kind: input, shape index: {}]
  %s1 = inlined_call_operand.vmem [shape: f32[32,16], index: 1, kind: input, shape index: {}]
  %s2 = inlined_call_operand.<no memory space> [shape: f32[1,1], index: 2, kind: input, shape index: {}]
  %s3 = inlined_call_operand.vmem [shape: f32[32,1], index: 3, kind: input, shape index: {}]
  %s4 = inlined_call_operand.vmem [shape: f32[32,1], index: 4, kind: input, shape index: {}]
  %s5 = inlined_call_operand.vmem [shape: f32[32,3], index: 5, kind: input, shape index: {}]
  %s6 = inlined_call_operand.<no memory space> [shape: f32[1,1], index: 6, kind: input, shape index: {}]
  %s7 = inlined_call_operand.vmem [shape: f32[32,1], index: 7, kind: input, shape index: {}]
  %s8 = inlined_call_operand.vmem [shape: f32[32,1], index: 8, kind: input, shape index: {}]
  %s9 = inlined_call_operand.vmem [shape: f32[16,32], index: 9, kind: input, shape index: {}]
  %s10 = inlined_call_operand.hbm [shape: f32[2,16,256], index: 10, kind: output, shape index: {}]
  %s11 = sld [smem:[#allocation0]]
  $region73: #{tpu_custom_call.1} parent=0
    _
  %s13 = ssub.s32 1, %s11
  %s14 = scalar_select 0, %s13, %s11
  %15 = sst [smem:[#allocation3]] %s2
  %16 = sst [smem:[#allocation4]] %s6
  $region1: #{tpu_custom_call.1} parent=0
    #allocation5 [shape = 'u8[32768]{0}', space=vmem, size = 0x8000, scoped, tag = 'output window, operand 0']
    #allocation6 [shape = 's32[2]{0}', space=sflag, size = 0x8, scoped, tag = 'scoped memory for tpu_custom_call.1']
    %17 = vsyncpa [#allocation6], 0
    %s18 = scalar_lea.sflag [#allocation6], 1
    %19 = vsyncpa %s18, 0
    loop: start=0, step=1, limit=4
    $region2: #{tpu_custom_call.1} parent=1 // loop_pre_header
      _
    $region3: #{tpu_custom_call.1} parent=1 // loop_header
      %s21 = sphi 0, %s25
      %p22 = scmp.ge.s32.totalorder %s21, 4
      %s31 = sphi 0, %s33
      %s34 = sphi 0, %s31
      %s35 = sphi 0, %s34
      %s51 = sphi 0, %s35
      %s55 = sphi 0, %s55
      %s57 = sphi 0, %s55
      %s58 = sphi 0, %s57
      %s72 = sphi 0, %s58
      %s76 = sphi 0, %s76
      %s78 = sphi 0, %s76
      %s79 = sphi 0, %s78
      %s93 = sphi 0, %s79
      %s97 = sphi 0, %s97
      %s99 = sphi 0, %s97
      %s100 = sphi 0, %s99
      %s114 = sphi 0, %s100
      %s118 = sphi 0, %s118
      %s120 = sphi 0, %s118
      %s121 = sphi 0, %s120
      %s135 = sphi 0, %s121
      %s139 = sphi 0, %s139
      %s141 = sphi 0, %s139
      %s142 = sphi 0, %s141
      %s156 = sphi 0, %s142
      %s160 = sphi 0, %s160
      %s162 = sphi 0, %s160
      %s163 = sphi 0, %s162
      %s177 = sphi 0, %s163
      %s181 = sphi 0, %s181
      %s183 = sphi 0, %s181
      %s184 = sphi 0, %s183
      %s198 = sphi 0, %s184
      %s202 = sphi 0, %s202
      %s204 = sphi 0, %s202
      %s205 = sphi 0, %s204
      %s219 = sphi 0, %s205
      %s223 = sphi 0, %s223
      %s225 = sphi 0, %s223
      %s226 = sphi 0, %s225
      %s240 = sphi 0, %s226
      %s246 = sphi 0, %s248
      %s249 = sphi 0, %s246
      %s250 = sphi 0, %s249
      %s266 = sphi 0, %s250
    $region4: #{tpu_custom_call.1} parent=1 // loop_header_branch
      %24 = sbr.rel (%p22) target = $region8
    $region5: #{tpu_custom_call.1} parent=1 // loop_body
      %s26 = ssub.s32 %s21, 1
      %s27 = ssub.s32 %s21, 2
      %s28 = sadd.s32 %s21, 1
      %s29 = ssub.s32 %s21, %s28
      %p30 = scmp.eq.s32.totalorder %s29, 0
      %s32 = sadd.s32 %s31, 1
      %s33 = scalar_select %p30, %s31, %s32
      %p36 = pneg %p30
      %p37 = scmp.eq.s32.totalorder %s21, 1
      %p38 = por %p36, %p37
      %p39 = scmp.ne.s32.totalorder %s31, %s34
      %p40 = scmp.eq.s32.totalorder %s21, 0
      %p41 = por %p39, %p40
      %p42 = scmp.ne.s32.totalorder %s31, %s34
      %p43 = scmp.eq.s32.totalorder %s26, 1
      %p44 = por %p42, %p43
      %p45 = scmp.ne.s32.totalorder %s34, %s35
      %p46 = scmp.eq.s32.totalorder %s26, 0
      %p47 = por %p45, %p46
      %p48 = scmp.ne.s32.totalorder %s34, %s35
      %p49 = scmp.eq.s32.totalorder %s27, 1
      %p50 = por %p48, %p49
      %p52 = scmp.ne.s32.totalorder %s35, %s51
      %p53 = scmp.eq.s32.totalorder %s27, 0
      %p54 = por %p52, %p53
      %s56 = sadd.s32 %s55, 1
      %p59 = scmp.eq.s32.totalorder %s21, 1
      %p60 = scmp.ne.s32.totalorder %s55, %s57
      %p61 = scmp.eq.s32.totalorder %s21, 0
      %p62 = por %p60, %p61
      %p63 = scmp.ne.s32.totalorder %s55, %s57
      %p64 = scmp.eq.s32.totalorder %s26, 1
      %p65 = por %p63, %p64
      %p66 = scmp.ne.s32.totalorder %s57, %s58
      %p67 = scmp.eq.s32.totalorder %s26, 0
      %p68 = por %p66, %p67
      %p69 = scmp.ne.s32.totalorder %s57, %s58
      %p70 = scmp.eq.s32.totalorder %s27, 1
      %p71 = por %p69, %p70
      %p73 = scmp.ne.s32.totalorder %s58, %s72
      %p74 = scmp.eq.s32.totalorder %s27, 0
      %p75 = por %p73, %p74
      %s77 = sadd.s32 %s76, 1
      %p80 = scmp.eq.s32.totalorder %s21, 1
      %p81 = scmp.ne.s32.totalorder %s76, %s78
      %p82 = scmp.eq.s32.totalorder %s21, 0
      %p83 = por %p81, %p82
      %p84 = scmp.ne.s32.totalorder %s76, %s78
      %p85 = scmp.eq.s32.totalorder %s26, 1
      %p86 = por %p84, %p85
      %p87 = scmp.ne.s32.totalorder %s78, %s79
      %p88 = scmp.eq.s32.totalorder %s26, 0
      %p89 = por %p87, %p88
      %p90 = scmp.ne.s32.totalorder %s78, %s79
      %p91 = scmp.eq.s32.totalorder %s27, 1
      %p92 = por %p90, %p91
      %p94 = scmp.ne.s32.totalorder %s79, %s93
      %p95 = scmp.eq.s32.totalorder %s27, 0
      %p96 = por %p94, %p95
      %s98 = sadd.s32 %s97, 1
      %p101 = scmp.eq.s32.totalorder %s21, 1
      %p102 = scmp.ne.s32.totalorder %s97, %s99
      %p103 = scmp.eq.s32.totalorder %s21, 0
      %p104 = por %p102, %p103
      %p105 = scmp.ne.s32.totalorder %s97, %s99
      %p106 = scmp.eq.s32.totalorder %s26, 1
      %p107 = por %p105, %p106
      %p108 = scmp.ne.s32.totalorder %s99, %s100
      %p109 = scmp.eq.s32.totalorder %s26, 0
      %p110 = por %p108, %p109
      %p111 = scmp.ne.s32.totalorder %s99, %s100
      %p112 = scmp.eq.s32.totalorder %s27, 1
      %p113 = por %p111, %p112
      %p115 = scmp.ne.s32.totalorder %s100, %s114
      %p116 = scmp.eq.s32.totalorder %s27, 0
      %p117 = por %p115, %p116
      %s119 = sadd.s32 %s118, 1
      %p122 = scmp.eq.s32.totalorder %s21, 1
      %p123 = scmp.ne.s32.totalorder %s118, %s120
      %p124 = scmp.eq.s32.totalorder %s21, 0
      %p125 = por %p123, %p124
      %p126 = scmp.ne.s32.totalorder %s118, %s120
      %p127 = scmp.eq.s32.totalorder %s26, 1
      %p128 = por %p126, %p127
      %p129 = scmp.ne.s32.totalorder %s120, %s121
      %p130 = scmp.eq.s32.totalorder %s26, 0
      %p131 = por %p129, %p130
      %p132 = scmp.ne.s32.totalorder %s120, %s121
      %p133 = scmp.eq.s32.totalorder %s27, 1
      %p134 = por %p132, %p133
      %p136 = scmp.ne.s32.totalorder %s121, %s135
      %p137 = scmp.eq.s32.totalorder %s27, 0
      %p138 = por %p136, %p137
      %s140 = sadd.s32 %s139, 1
      %p143 = scmp.eq.s32.totalorder %s21, 1
      %p144 = scmp.ne.s32.totalorder %s139, %s141
      %p145 = scmp.eq.s32.totalorder %s21, 0
      %p146 = por %p144, %p145
      %p147 = scmp.ne.s32.totalorder %s139, %s141
      %p148 = scmp.eq.s32.totalorder %s26, 1
      %p149 = por %p147, %p148
      %p150 = scmp.ne.s32.totalorder %s141, %s142
      %p151 = scmp.eq.s32.totalorder %s26, 0
      %p152 = por %p150, %p151
      %p153 = scmp.ne.s32.totalorder %s141, %s142
      %p154 = scmp.eq.s32.totalorder %s27, 1
      %p155 = por %p153, %p154
      %p157 = scmp.ne.s32.totalorder %s142, %s156
      %p158 = scmp.eq.s32.totalorder %s27, 0
      %p159 = por %p157, %p158
      %s161 = sadd.s32 %s160, 1
      %p164 = scmp.eq.s32.totalorder %s21, 1
      %p165 = scmp.ne.s32.totalorder %s160, %s162
      %p166 = scmp.eq.s32.totalorder %s21, 0
      %p167 = por %p165, %p166
      %p168 = scmp.ne.s32.totalorder %s160, %s162
      %p169 = scmp.eq.s32.totalorder %s26, 1
      %p170 = por %p168, %p169
      %p171 = scmp.ne.s32.totalorder %s162, %s163
      %p172 = scmp.eq.s32.totalorder %s26, 0
      %p173 = por %p171, %p172
      %p174 = scmp.ne.s32.totalorder %s162, %s163
      %p175 = scmp.eq.s32.totalorder %s27, 1
      %p176 = por %p174, %p175
      %p178 = scmp.ne.s32.totalorder %s163, %s177
      %p179 = scmp.eq.s32.totalorder %s27, 0
      %p180 = por %p178, %p179
      %s182 = sadd.s32 %s181, 1
      %p185 = scmp.eq.s32.totalorder %s21, 1
      %p186 = scmp.ne.s32.totalorder %s181, %s183
      %p187 = scmp.eq.s32.totalorder %s21, 0
      %p188 = por %p186, %p187
      %p189 = scmp.ne.s32.totalorder %s181, %s183
      %p190 = scmp.eq.s32.totalorder %s26, 1
      %p191 = por %p189, %p190
      %p192 = scmp.ne.s32.totalorder %s183, %s184
      %p193 = scmp.eq.s32.totalorder %s26, 0
      %p194 = por %p192, %p193
      %p195 = scmp.ne.s32.totalorder %s183, %s184
      %p196 = scmp.eq.s32.totalorder %s27, 1
      %p197 = por %p195, %p196
      %p199 = scmp.ne.s32.totalorder %s184, %s198
      %p200 = scmp.eq.s32.totalorder %s27, 0
      %p201 = por %p199, %p200
      %s203 = sadd.s32 %s202, 1
      %p206 = scmp.eq.s32.totalorder %s21, 1
      %p207 = scmp.ne.s32.totalorder %s202, %s204
      %p208 = scmp.eq.s32.totalorder %s21, 0
      %p209 = por %p207, %p208
      %p210 = scmp.ne.s32.totalorder %s202, %s204
      %p211 = scmp.eq.s32.totalorder %s26, 1
      %p212 = por %p210, %p211
      %p213 = scmp.ne.s32.totalorder %s204, %s205
      %p214 = scmp.eq.s32.totalorder %s26, 0
      %p215 = por %p213, %p214
      %p216 = scmp.ne.s32.totalorder %s204, %s205
      %p217 = scmp.eq.s32.totalorder %s27, 1
      %p218 = por %p216, %p217
      %p220 = scmp.ne.s32.totalorder %s205, %s219
      %p221 = scmp.eq.s32.totalorder %s27, 0
      %p222 = por %p220, %p221
      %s224 = sadd.s32 %s223, 1
      %p227 = scmp.eq.s32.totalorder %s21, 1
      %p228 = scmp.ne.s32.totalorder %s223, %s225
      %p229 = scmp.eq.s32.totalorder %s21, 0
      %p230 = por %p228, %p229
      %p231 = scmp.ne.s32.totalorder %s223, %s225
      %p232 = scmp.eq.s32.totalorder %s26, 1
      %p233 = por %p231, %p232
      %p234 = scmp.ne.s32.totalorder %s225, %s226
      %p235 = scmp.eq.s32.totalorder %s26, 0
      %p236 = por %p234, %p235
      %p237 = scmp.ne.s32.totalorder %s225, %s226
      %p238 = scmp.eq.s32.totalorder %s27, 1
      %p239 = por %p237, %p238
      %p241 = scmp.ne.s32.totalorder %s226, %s240
      %p242 = scmp.eq.s32.totalorder %s27, 0
      %p243 = por %p241, %p242
      %s244 = ssub.s32 %s21, %s28
      %p245 = scmp.eq.s32.totalorder %s244, 0
      %s247 = sadd.s32 %s246, 1
      %s248 = scalar_select %p245, %s246, %s247
      %p251 = pneg %p245
      %p252 = scmp.eq.s32.totalorder %s21, 1
      %p253 = por %p251, %p252
      %p254 = scmp.ne.s32.totalorder %s246, %s249
      %p255 = scmp.eq.s32.totalorder %s21, 0
      %p256 = por %p254, %p255
      %p257 = scmp.ne.s32.totalorder %s246, %s249
      %p258 = scmp.eq.s32.totalorder %s26, 1
      %p259 = por %p257, %p258
      %p260 = scmp.ne.s32.totalorder %s249, %s250
      %p261 = scmp.eq.s32.totalorder %s26, 0
      %p262 = por %p260, %p261
      %p263 = scmp.ne.s32.totalorder %s249, %s250
      %p264 = scmp.eq.s32.totalorder %s27, 1
      %p265 = por %p263, %p264
      %p267 = scmp.ne.s32.totalorder %s250, %s266
      %p268 = scmp.eq.s32.totalorder %s27, 0
      %p269 = por %p267, %p268
      %p270 = scmp.le.s32.totalorder 1, %s21
      %p271 = scmp.lt.s32.totalorder %s21, 3
      %p272 = pnand %p270, %p271
      %p273 = pneg %p272
      // Predicated region
      $region9: #{tpu_custom_call.1} parent=5 // pred_check
        _
      $region10: #{tpu_custom_call.1} parent=5 // pred_check_branch
        %275 = sbr.rel (%p272) target = $region12
      $region11: #{tpu_custom_call.1} parent=5 // pred_region
        %s276 = ssub.s32 %s21, 1
        // Predicated region
        $region13: #{tpu_custom_call.1} parent=11 // pred_check
          %p277 = pneg %p68
        $region14: #{tpu_custom_call.1} parent=11 // pred_check_branch
          %279 = sbr.rel (%p277) target = $region16
        $region15: #{tpu_custom_call.1} parent=11 // pred_region
          _
        $region16: #{tpu_custom_call.1} parent=11 // pred_fallthru
          _
        // Predicated region
        $region17: #{tpu_custom_call.1} parent=11 // pred_check
          %p280 = pneg %p89
        $region18: #{tpu_custom_call.1} parent=11 // pred_check_branch
          %282 = sbr.rel (%p280) target = $region20
        $region19: #{tpu_custom_call.1} parent=11 // pred_region
          _
        $region20: #{tpu_custom_call.1} parent=11 // pred_fallthru
          _
        // Predicated region
        $region21: #{tpu_custom_call.1} parent=11 // pred_check
          %p283 = pneg %p110
        $region22: #{tpu_custom_call.1} parent=11 // pred_check_branch
          %285 = sbr.rel (%p283) target = $region24
        $region23: #{tpu_custom_call.1} parent=11 // pred_region
          _
        $region24: #{tpu_custom_call.1} parent=11 // pred_fallthru
          _
        // Predicated region
        $region25: #{tpu_custom_call.1} parent=11 // pred_check
          %p286 = pneg %p131
        $region26: #{tpu_custom_call.1} parent=11 // pred_check_branch
          %288 = sbr.rel (%p286) target = $region28
        $region27: #{tpu_custom_call.1} parent=11 // pred_region
          _
        $region28: #{tpu_custom_call.1} parent=11 // pred_fallthru
          _
        // Predicated region
        $region29: #{tpu_custom_call.1} parent=11 // pred_check
          %p289 = pneg %p152
        $region30: #{tpu_custom_call.1} parent=11 // pred_check_branch
          %291 = sbr.rel (%p289) target = $region32
        $region31: #{tpu_custom_call.1} parent=11 // pred_region
          _
        $region32: #{tpu_custom_call.1} parent=11 // pred_fallthru
          _
        // Predicated region
        $region33: #{tpu_custom_call.1} parent=11 // pred_check
          %p292 = pneg %p173
        $region34: #{tpu_custom_call.1} parent=11 // pred_check_branch
          %294 = sbr.rel (%p292) target = $region36
        $region35: #{tpu_custom_call.1} parent=11 // pred_region
          _
        $region36: #{tpu_custom_call.1} parent=11 // pred_fallthru
          _
        // Predicated region
        $region37: #{tpu_custom_call.1} parent=11 // pred_check
          %p295 = pneg %p194
        $region38: #{tpu_custom_call.1} parent=11 // pred_check_branch
          %297 = sbr.rel (%p295) target = $region40
        $region39: #{tpu_custom_call.1} parent=11 // pred_region
          _
        $region40: #{tpu_custom_call.1} parent=11 // pred_fallthru
          _
        // Predicated region
        $region41: #{tpu_custom_call.1} parent=11 // pred_check
          %p298 = pneg %p215
        $region42: #{tpu_custom_call.1} parent=11 // pred_check_branch
          %300 = sbr.rel (%p298) target = $region44
        $region43: #{tpu_custom_call.1} parent=11 // pred_region
          _
        $region44: #{tpu_custom_call.1} parent=11 // pred_fallthru
          _
        // Predicated region
        $region45: #{tpu_custom_call.1} parent=11 // pred_check
          %p301 = pneg %p236
        $region46: #{tpu_custom_call.1} parent=11 // pred_check_branch
          %303 = sbr.rel (%p301) target = $region48
        $region47: #{tpu_custom_call.1} parent=11 // pred_region
          _
        $region48: #{tpu_custom_call.1} parent=11 // pred_fallthru
          _
      $region12: #{tpu_custom_call.1} parent=5 // pred_fallthru
        _
      %p304 = scmp.lt.s32.totalorder %s21, 2
      // Predicated region
      $region49: #{tpu_custom_call.1} parent=5 // pred_check
        %p305 = pneg %p304
      $region50: #{tpu_custom_call.1} parent=5 // pred_check_branch
        %307 = sbr.rel (%p305) target = $region52
      $region51: #{tpu_custom_call.1} parent=5 // pred_region
        // Predicated region
        $region53: #{tpu_custom_call.1} parent=51 // pred_check
          %p308 = pneg %p41
        $region54: #{tpu_custom_call.1} parent=51 // pred_check_branch
          %310 = sbr.rel (%p308) target = $region56
        $region55: #{tpu_custom_call.1} parent=51 // pred_region
          %p311 = scmp.lt.s32.totalorder %s21, 1
          %s312 = scalar_select %p311, %s21, 1
          %s313 = smul.addr %s312, 4
          %s314 = smul.addr %s313, 8
          %s315 = scalar_lea.vmem %s0, %s314
        $region56: #{tpu_custom_call.1} parent=51 // pred_fallthru
          _
      $region52: #{tpu_custom_call.1} parent=5 // pred_fallthru
        _
      %p316 = scmp.le.s32.totalorder 1, %s21
      %p317 = scmp.lt.s32.totalorder %s21, 3
      %p318 = pnand %p316, %p317
      %p319 = pneg %p318
      // Predicated region
      $region57: #{tpu_custom_call.1} parent=5 // pred_check
        _
      $region58: #{tpu_custom_call.1} parent=5 // pred_check_branch
        %321 = sbr.rel (%p318) target = $region60
      $region59: #{tpu_custom_call.1} parent=5 // pred_region
        %s322 = ssub.s32 %s21, 1
        %p323 = scmp.lt.s32.totalorder %s26, 1
        %s324 = scalar_select %p323, %s26, 1
        %s325 = smul.addr %s324, 4
        %s326 = smul.addr %s325, 8
        %s327 = scalar_lea.vmem %s0, %s326
        %p328 = pneg %p47
        %p329 = pneg %p44
        %p330 = pneg %p68
        %p331 = pneg %p65
        %p332 = pneg %p89
        %p333 = pneg %p86
        %p334 = pneg %p110
        %p335 = pneg %p107
        %p336 = pneg %p131
        %p337 = pneg %p128
        %p338 = pneg %p152
        %p339 = pneg %p149
        %p340 = pneg %p173
        %p341 = pneg %p170
        %p342 = pneg %p194
        %p343 = pneg %p191
        %p344 = pneg %p215
        %p345 = pneg %p212
        %p346 = pneg %p236
        %p347 = pneg %p233
        %p348 = pneg %p262
        %p349 = pneg %p259
        %s350 = sand.u32 %s249, 1
        %s351 = scalar_lea.sflag [#allocation6], %s350
        %s352 = sand.u32 %s249, 1
        %s353 = smul.addr %s352, 32
        %s354 = scalar_lea.vmem [#allocation5], %s353
        %p355 = scmp.lt.s32.totalorder %s26, 1
        %s356 = scalar_select %p355, %s26, 1
        %s357 = smul.addr %s356, 4
        %s358 = smul.addr %s357, 8
        %s359 = scalar_lea.vmem %s0, %s358
        %v360 = vld [vmem:[%s359] sm:$0xff]
        %v361 = vld [vmem:[%s359 + $0x8] sm:$0xff]
        %v362 = vld [vmem:[%s359 + $0x10] sm:$0xff]
        %v363 = vld [vmem:[%s359 + $0x18] sm:$0xff]
        %v364 = vld [vmem:[%s1] sm:$0xff]
        %v365 = vld [vmem:[%s1 + $0x8] sm:$0xff]
        %v366 = vld [vmem:[%s1 + $0x10] sm:$0xff]
        %v367 = vld [vmem:[%s1 + $0x18] sm:$0xff]
        %vm368 = vcmask 130048
        %v370 = vsel %vm368, %v364, 0
        %v373 = vsel %vm368, %v365, 0
        %v376 = vsel %vm368, %v366, 0
        %v379 = vsel %vm368, %v367, 0
        %381 = vmatpush.msra.mxu0 0.0
        %382 = vmatpush.msra.mxu0 0.0
        %383 = vmatpush.msra.mxu0 0.0
        %384 = vmatpush.msra.mxu0 0.0
        %385 = vmatpush.msra.mxu0 0.0
        %386 = vmatpush.msra.mxu0 0.0
        %387 = vmatpush.msra.mxu0 0.0
        %388 = vmatpush.msra.mxu0 0.0
        %389 = vmatpush.msra.mxu0 0.0
        %390 = vmatpush.msra.mxu0 0.0
        %391 = vmatpush.msra.mxu0 0.0
        %392 = vmatpush.msra.mxu0 0.0
        %393 = vmatpush.msra.mxu0 0.0
        %394 = vmatpush.msra.mxu0 0.0
        %395 = vmatpush.msra.mxu0 %v362
        %396 = vmatpush.msra.mxu0 %v360
        %397 = vmatmul.f32.gmra.mxu0 %v370
        %v398 = vpop.f32.mrf.mxu0
        %v399 = vadd.f32 0.0, %v398
        %400 = vmatmul.f32.gmra.mxu0 %v373
        %v401 = vpop.f32.mrf.mxu0
        %v402 = vadd.f32 0.0, %v401
        %403 = vmatmul.f32.gmra.mxu0 %v376
        %v404 = vpop.f32.mrf.mxu0
        %v405 = vadd.f32 0.0, %v404
        %406 = vmatmul.f32.gmra.mxu0 %v379
        %v407 = vpop.f32.mrf.mxu0
        %v408 = vadd.f32 0.0, %v407
        %409 = vdwg.mxu0
        %410 = vmatpush.msra.mxu0 0.0
        %411 = vmatpush.msra.mxu0 0.0
        %412 = vmatpush.msra.mxu0 0.0
        %413 = vmatpush.msra.mxu0 0.0
        %414 = vmatpush.msra.mxu0 0.0
        %415 = vmatpush.msra.mxu0 0.0
        %416 = vmatpush.msra.mxu0 0.0
        %417 = vmatpush.msra.mxu0 0.0
        %418 = vmatpush.msra.mxu0 0.0
        %419 = vmatpush.msra.mxu0 0.0
        %420 = vmatpush.msra.mxu0 0.0
        %421 = vmatpush.msra.mxu0 0.0
        %422 = vmatpush.msra.mxu0 0.0
        %423 = vmatpush.msra.mxu0 0.0
        %424 = vmatpush.msra.mxu0 %v363
        %425 = vmatpush.msra.mxu0 %v361
        %426 = vmatmul.f32.gmra.mxu0 %v370
        %v427 = vpop.f32.mrf.mxu0
        %v428 = vadd.f32 0.0, %v427
        %429 = vmatmul.f32.gmra.mxu0 %v373
        %v430 = vpop.f32.mrf.mxu0
        %v431 = vadd.f32 0.0, %v430
        %432 = vmatmul.f32.gmra.mxu0 %v376
        %v433 = vpop.f32.mrf.mxu0
        %v434 = vadd.f32 0.0, %v433
        %435 = vmatmul.f32.gmra.mxu0 %v379
        %v436 = vpop.f32.mrf.mxu0
        %v437 = vadd.f32 0.0, %v436
        %438 = vdwg.mxu0
        %s439 = sld [smem:[#allocation3]]
        %vm440 = vcmp.ge.f32.partialorder %v399, 0.0
        %vm441 = vcmp.ge.f32.partialorder %v428, 0.0
        %vm442 = vcmp.ge.f32.partialorder %v402, 0.0
        %vm443 = vcmp.ge.f32.partialorder %v431, 0.0
        %vm444 = vcmp.ge.f32.partialorder %v405, 0.0
        %vm445 = vcmp.ge.f32.partialorder %v434, 0.0
        %vm446 = vcmp.ge.f32.partialorder %v408, 0.0
        %vm447 = vcmp.ge.f32.partialorder %v437, 0.0
        %v448 = vstv %s439
        %v449 = vmul.f32 %v448, %v399
        %v450 = vmul.f32 %v448, %v428
        %v451 = vmul.f32 %v448, %v402
        %v452 = vmul.f32 %v448, %v431
        %v453 = vmul.f32 %v448, %v405
        %v454 = vmul.f32 %v448, %v434
        %v455 = vmul.f32 %v448, %v408
        %v456 = vmul.f32 %v448, %v437
        %v457 = vsel %vm440, %v399, %v449
        %v458 = vsel %vm441, %v428, %v450
        %v459 = vsel %vm442, %v402, %v451
        %v460 = vsel %vm443, %v431, %v452
        %v461 = vsel %vm444, %v405, %v453
        %v462 = vsel %vm445, %v434, %v454
        %v463 = vsel %vm446, %v408, %v455
        %v464 = vsel %vm447, %v437, %v456
        %v465 = vld [vmem:[%s3] sm:$0xff]
        %v466 = vld [vmem:[%s3 + $0x8] sm:$0xff]
        %v467 = vld [vmem:[%s3 + $0x10] sm:$0xff]
        %v468 = vld [vmem:[%s3 + $0x18] sm:$0xff]
        %v469 = vld [vmem:[%s4] sm:$0xff]
        %v470 = vld [vmem:[%s4 + $0x8] sm:$0xff]
        %v471 = vld [vmem:[%s4 + $0x10] sm:$0xff]
        %v472 = vld [vmem:[%s4 + $0x18] sm:$0xff]
        %v473 = vadd.f32 %v457, %v458
        %v474 = vadd.f32 %v473, %v459
        %v475 = vadd.f32 %v474, %v460
        %v476 = vadd.f32 %v475, %v461
        %v477 = vadd.f32 %v476, %v462
        %v478 = vadd.f32 %v477, %v463
        %v479 = vadd.f32 %v478, %v464
        %480 = vadd.xlane.f32.xlu0 %v479
        %v481 = vpop.xlane.xlu0 %480
        %v482 = vrot.slane %v481, 4
        %v483 = vadd.f32 %v481, %v482
        %v484 = vrot.slane %v483, 2
        %v485 = vadd.f32 %v483, %v484
        %v486 = vrot.slane %v485, 1
        %v487 = vadd.f32 %v485, %v486
        %s488 = vtos %v487
        %v489 = vmul.f32 %v457, %v457
        %v490 = vmul.f32 %v458, %v458
        %v491 = vmul.f32 %v459, %v459
        %v492 = vmul.f32 %v460, %v460
        %v493 = vmul.f32 %v461, %v461
        %v494 = vmul.f32 %v462, %v462
        %v495 = vmul.f32 %v463, %v463
        %v496 = vmul.f32 %v464, %v464
        %v497 = vadd.f32 %v489, %v490
        %v498 = vadd.f32 %v497, %v491
        %v499 = vadd.f32 %v498, %v492
        %v500 = vadd.f32 %v499, %v493
        %v501 = vadd.f32 %v500, %v494
        %v502 = vadd.f32 %v501, %v495
        %v503 = vadd.f32 %v502, %v496
        %504 = vadd.xlane.f32.xlu0 %v503
        %v505 = vpop.xlane.xlu0 %504
        %v506 = vrot.slane %v505, 4
        %v507 = vadd.f32 %v505, %v506
        %v508 = vrot.slane %v507, 2
        %v509 = vadd.f32 %v507, %v508
        %v510 = vrot.slane %v509, 1
        %v511 = vadd.f32 %v509, %v510
        %s512 = vtos %v511
        %s513 = smul.f32 %s488, 0.00012207031
        %s514 = smul.f32 %s512, 0.00012207031
        %s515 = smul.f32 %s513, %s513
        %s516 = ssub.f32 %s514, %s515
        %s517 = smax.f32 %s516, 0.0
        %s518 = sadd.f32 %s517, 1e-08
        %v519 = vstv %s518
        %v520 = vrsqrt.pop %v519
        %v521 = vmul.f32 %v520, %v519
        %v522 = vmul.f32 %v521, %v520
        %v523 = vmul.f32 0.5, %v522
        %v524 = vsub.f32 1.5, %v523
        %v525 = vmul.f32 %v520, %v524
        %vm526 = vweird.f32 %v519
        %vm527 = vweird.f32 %v520
        %vm528 = vmor %vm526, %vm527
        %v529 = vsel %vm528, %v520, %v525
        %s530 = vtos %v529
        %v531 = vstv %s530
        %v532 = vmul.f32 %v465, %v531
        %v533 = vmul.f32 %v466, %v531
        %v534 = vmul.f32 %v467, %v531
        %v535 = vmul.f32 %v468, %v531
        %v536 = vstv %s513
        %v537 = vmul.f32 %v536, %v532
        %v538 = vmul.f32 %v536, %v533
        %v539 = vmul.f32 %v536, %v534
        %v540 = vmul.f32 %v536, %v535
        %v541 = vsub.f32 %v469, %v537
        %v542 = vsub.f32 %v470, %v538
        %v543 = vsub.f32 %v471, %v539
        %v544 = vsub.f32 %v472, %v540
        %546 = vset.pattern.permute.xlu0 0
        %547 = vperm.xlu0 %546, %v532
        %v548 = vpop.permute.xlu0 %547
        %551 = vset.pattern.permute.xlu0 0
        %552 = vperm.xlu0 %551, %v533
        %v553 = vpop.permute.xlu0 %552
        %556 = vset.pattern.permute.xlu0 0
        %557 = vperm.xlu0 %556, %v534
        %v558 = vpop.permute.xlu0 %557
        %561 = vset.pattern.permute.xlu0 0
        %562 = vperm.xlu0 %561, %v535
        %v563 = vpop.permute.xlu0 %562
        %v565 = vmul.f32 %v457, %v548
        %v566 = vmul.f32 %v458, %v548
        %v567 = vmul.f32 %v459, %v553
        %v568 = vmul.f32 %v460, %v553
        %v569 = vmul.f32 %v461, %v558
        %v570 = vmul.f32 %v462, %v558
        %v571 = vmul.f32 %v463, %v563
        %v572 = vmul.f32 %v464, %v563
        %574 = vset.pattern.permute.xlu0 0
        %575 = vperm.xlu0 %574, %v541
        %v576 = vpop.permute.xlu0 %575
        %579 = vset.pattern.permute.xlu0 0
        %580 = vperm.xlu0 %579, %v542
        %v581 = vpop.permute.xlu0 %580
        %584 = vset.pattern.permute.xlu0 0
        %585 = vperm.xlu0 %584, %v543
        %v586 = vpop.permute.xlu0 %585
        %589 = vset.pattern.permute.xlu0 0
        %590 = vperm.xlu0 %589, %v544
        %v591 = vpop.permute.xlu0 %590
        %v593 = vadd.f32 %v565, %v576
        %v594 = vadd.f32 %v566, %v576
        %v595 = vadd.f32 %v567, %v581
        %v596 = vadd.f32 %v568, %v581
        %v597 = vadd.f32 %v569, %v586
        %v598 = vadd.f32 %v570, %v586
        %v599 = vadd.f32 %v571, %v591
        %v600 = vadd.f32 %v572, %v591
        %vm601 = vcmask 7168
        %602 = vst.msk [vmem:[#allocation2] sm:$0xff] %vm601, 0.0
        %603 = vst.msk [vmem:[#allocation2 + $0x18] sm:$0xff] %vm601, 0.0
        %604 = vst.msk [vmem:[#allocation2 + $0x30] sm:$0xff] %vm601, 0.0
        %605 = vst.msk [vmem:[#allocation2 + $0x48] sm:$0xff] %vm601, 0.0
        %vm606 = vcmask 15368
        %607 = vst.msk [vmem:[#allocation2 + $0x10] sm:$0xff] %vm606, 0.0
        %608 = vst.msk [vmem:[#allocation2 + $0x28] sm:$0xff] %vm606, 0.0
        %609 = vst.msk [vmem:[#allocation2 + $0x40] sm:$0xff] %vm606, 0.0
        %610 = vst.msk [vmem:[#allocation2 + $0x58] sm:$0xff] %vm606, 0.0
        %619 = vrot.lane.b32.xlu0 %v593, 1
        %v620 = vpop.permute.xlu0 %619
        %621 = vrot.lane.b32.xlu0 %v594, 1
        %v622 = vpop.permute.xlu0 %621
        %623 = vrot.lane.b32.xlu0 %v595, 1
        %v624 = vpop.permute.xlu0 %623
        %625 = vrot.lane.b32.xlu0 %v596, 1
        %v626 = vpop.permute.xlu0 %625
        %627 = vrot.lane.b32.xlu0 %v597, 1
        %v628 = vpop.permute.xlu0 %627
        %629 = vrot.lane.b32.xlu0 %v598, 1
        %v630 = vpop.permute.xlu0 %629
        %631 = vrot.lane.b32.xlu0 %v599, 1
        %v632 = vpop.permute.xlu0 %631
        %633 = vrot.lane.b32.xlu0 %v600, 1
        %v634 = vpop.permute.xlu0 %633
        %v635 = vsel %vm601, %v620, %v622
        %v636 = vsel %vm601, %v624, %v626
        %v637 = vsel %vm601, %v628, %v630
        %v638 = vsel %vm601, %v632, %v634
        %vm651 = vcmask 1047560
        %652 = vst.msk [vmem:[#allocation2] sm:$0xff] %vm651, %v620
        %653 = vst [vmem:[#allocation2 + $0x8] sm:$0xff] %v635
        %654 = vst.msk [vmem:[#allocation2 + $0x10] sm:$0xff] %vm601, %v622
        %655 = vst.msk [vmem:[#allocation2 + $0x18] sm:$0xff] %vm651, %v624
        %656 = vst [vmem:[#allocation2 + $0x20] sm:$0xff] %v636
        %657 = vst.msk [vmem:[#allocation2 + $0x28] sm:$0xff] %vm601, %v626
        %658 = vst.msk [vmem:[#allocation2 + $0x30] sm:$0xff] %vm651, %v628
        %659 = vst [vmem:[#allocation2 + $0x38] sm:$0xff] %v637
        %660 = vst.msk [vmem:[#allocation2 + $0x40] sm:$0xff] %vm601, %v630
        %661 = vst.msk [vmem:[#allocation2 + $0x48] sm:$0xff] %vm651, %v632
        %662 = vst [vmem:[#allocation2 + $0x50] sm:$0xff] %v638
        %663 = vst.msk [vmem:[#allocation2 + $0x58] sm:$0xff] %vm601, %v634
        %v664 = vld [vmem:[%s5] sm:$0xff]
        %v665 = vld [vmem:[%s5 + $0x8] sm:$0xff]
        %v666 = vld [vmem:[%s5 + $0x10] sm:$0xff]
        %v667 = vld [vmem:[%s5 + $0x18] sm:$0xff]
        %v668 = vld [vmem:[#allocation2] sm:$0xff]
        %v669 = vld [vmem:[#allocation2 + $0x8] sm:$0xff]
        %v670 = vld [vmem:[#allocation2 + $0x18] sm:$0xff]
        %v671 = vld [vmem:[#allocation2 + $0x20] sm:$0xff]
        %v672 = vld [vmem:[#allocation2 + $0x30] sm:$0xff]
        %v673 = vld [vmem:[#allocation2 + $0x38] sm:$0xff]
        %v674 = vld [vmem:[#allocation2 + $0x48] sm:$0xff]
        %v675 = vld [vmem:[#allocation2 + $0x50] sm:$0xff]
        %677 = vset.pattern.permute.xlu0 0
        %678 = vperm.xlu0 %677, %v664
        %v679 = vpop.permute.xlu0 %678
        %682 = vset.pattern.permute.xlu0 0
        %683 = vperm.xlu0 %682, %v665
        %v684 = vpop.permute.xlu0 %683
        %687 = vset.pattern.permute.xlu0 0
        %688 = vperm.xlu0 %687, %v666
        %v689 = vpop.permute.xlu0 %688
        %692 = vset.pattern.permute.xlu0 0
        %693 = vperm.xlu0 %692, %v667
        %v694 = vpop.permute.xlu0 %693
        %v696 = vmul.f32 %v679, %v668
        %v697 = vmul.f32 %v679, %v669
        %v698 = vmul.f32 %v684, %v670
        %v699 = vmul.f32 %v684, %v671
        %v700 = vmul.f32 %v689, %v672
        %v701 = vmul.f32 %v689, %v673
        %v702 = vmul.f32 %v694, %v674
        %v703 = vmul.f32 %v694, %v675
        %v704 = vld [vmem:[#allocation2] sm:$0xff]
        %v705 = vld [vmem:[#allocation2 + $0x8] sm:$0xff]
        %v706 = vld [vmem:[#allocation2 + $0x10] sm:$0xff]
        %v707 = vld [vmem:[#allocation2 + $0x18] sm:$0xff]
        %v708 = vld [vmem:[#allocation2 + $0x20] sm:$0xff]
        %v709 = vld [vmem:[#allocation2 + $0x28] sm:$0xff]
        %v710 = vld [vmem:[#allocation2 + $0x30] sm:$0xff]
        %v711 = vld [vmem:[#allocation2 + $0x38] sm:$0xff]
        %v712 = vld [vmem:[#allocation2 + $0x40] sm:$0xff]
        %v713 = vld [vmem:[#allocation2 + $0x48] sm:$0xff]
        %v714 = vld [vmem:[#allocation2 + $0x50] sm:$0xff]
        %v715 = vld [vmem:[#allocation2 + $0x58] sm:$0xff]
        %716 = vset.pattern.permute.xlu0 1
        %717 = vperm.xlu0 %716, %v664
        %v718 = vpop.permute.xlu0 %717
        %720 = vset.pattern.permute.xlu0 1
        %721 = vperm.xlu0 %720, %v665
        %v722 = vpop.permute.xlu0 %721
        %724 = vset.pattern.permute.xlu0 1
        %725 = vperm.xlu0 %724, %v666
        %v726 = vpop.permute.xlu0 %725
        %728 = vset.pattern.permute.xlu0 1
        %729 = vperm.xlu0 %728, %v667
        %v730 = vpop.permute.xlu0 %729
        %v732 = vmul.f32 %v718, %v704
        %v733 = vmul.f32 %v718, %v705
        %v734 = vmul.f32 %v718, %v706
        %v735 = vmul.f32 %v722, %v707
        %v736 = vmul.f32 %v722, %v708
        %v737 = vmul.f32 %v722, %v709
        %v738 = vmul.f32 %v726, %v710
        %v739 = vmul.f32 %v726, %v711
        %v740 = vmul.f32 %v726, %v712
        %v741 = vmul.f32 %v730, %v713
        %v742 = vmul.f32 %v730, %v714
        %v743 = vmul.f32 %v730, %v715
        %756 = vrot.lane.b32.xlu0 %v732, 127
        %v757 = vpop.permute.xlu0 %756
        %758 = vrot.lane.b32.xlu0 %v733, 127
        %v759 = vpop.permute.xlu0 %758
        %760 = vrot.lane.b32.xlu0 %v734, 127
        %v761 = vpop.permute.xlu0 %760
        %762 = vrot.lane.b32.xlu0 %v735, 127
        %v763 = vpop.permute.xlu0 %762
        %764 = vrot.lane.b32.xlu0 %v736, 127
        %v765 = vpop.permute.xlu0 %764
        %766 = vrot.lane.b32.xlu0 %v737, 127
        %v767 = vpop.permute.xlu0 %766
        %768 = vrot.lane.b32.xlu0 %v738, 127
        %v769 = vpop.permute.xlu0 %768
        %770 = vrot.lane.b32.xlu0 %v739, 127
        %v771 = vpop.permute.xlu0 %770
        %772 = vrot.lane.b32.xlu0 %v740, 127
        %v773 = vpop.permute.xlu0 %772
        %774 = vrot.lane.b32.xlu0 %v741, 127
        %v775 = vpop.permute.xlu0 %774
        %776 = vrot.lane.b32.xlu0 %v742, 127
        %v777 = vpop.permute.xlu0 %776
        %778 = vrot.lane.b32.xlu0 %v743, 127
        %v779 = vpop.permute.xlu0 %778
        %vm780 = vcmask 1039360
        %v781 = vsel %vm780, %v757, %v759
        %v782 = vsel %vm780, %v759, %v761
        %v783 = vsel %vm780, %v763, %v765
        %v784 = vsel %vm780, %v765, %v767
        %v785 = vsel %vm780, %v769, %v771
        %v786 = vsel %vm780, %v771, %v773
        %v787 = vsel %vm780, %v775, %v777
        %v788 = vsel %vm780, %v777, %v779
        %v797 = vadd.f32 %v696, %v781
        %v798 = vadd.f32 %v697, %v782
        %v799 = vadd.f32 %v698, %v783
        %v800 = vadd.f32 %v699, %v784
        %v801 = vadd.f32 %v700, %v785
        %v802 = vadd.f32 %v701, %v786
        %v803 = vadd.f32 %v702, %v787
        %v804 = vadd.f32 %v703, %v788
        %805 = vset.pattern.permute.xlu0 2
        %806 = vperm.xlu0 %805, %v664
        %v807 = vpop.permute.xlu0 %806
        %809 = vset.pattern.permute.xlu0 2
        %810 = vperm.xlu0 %809, %v665
        %v811 = vpop.permute.xlu0 %810
        %813 = vset.pattern.permute.xlu0 2
        %814 = vperm.xlu0 %813, %v666
        %v815 = vpop.permute.xlu0 %814
        %817 = vset.pattern.permute.xlu0 2
        %818 = vperm.xlu0 %817, %v667
        %v819 = vpop.permute.xlu0 %818
        %v821 = vmul.f32 %v807, %v704
        %v822 = vmul.f32 %v807, %v705
        %v823 = vmul.f32 %v807, %v706
        %v824 = vmul.f32 %v811, %v707
        %v825 = vmul.f32 %v811, %v708
        %v826 = vmul.f32 %v811, %v709
        %v827 = vmul.f32 %v815, %v710
        %v828 = vmul.f32 %v815, %v711
        %v829 = vmul.f32 %v815, %v712
        %v830 = vmul.f32 %v819, %v713
        %v831 = vmul.f32 %v819, %v714
        %v832 = vmul.f32 %v819, %v715
        %845 = vrot.lane.b32.xlu0 %v821, 126
        %v846 = vpop.permute.xlu0 %845
        %847 = vrot.lane.b32.xlu0 %v822, 126
        %v848 = vpop.permute.xlu0 %847
        %849 = vrot.lane.b32.xlu0 %v823, 126
        %v850 = vpop.permute.xlu0 %849
        %851 = vrot.lane.b32.xlu0 %v824, 126
        %v852 = vpop.permute.xlu0 %851
        %853 = vrot.lane.b32.xlu0 %v825, 126
        %v854 = vpop.permute.xlu0 %853
        %855 = vrot.lane.b32.xlu0 %v826, 126
        %v856 = vpop.permute.xlu0 %855
        %857 = vrot.lane.b32.xlu0 %v827, 126
        %v858 = vpop.permute.xlu0 %857
        %859 = vrot.lane.b32.xlu0 %v828, 126
        %v860 = vpop.permute.xlu0 %859
        %861 = vrot.lane.b32.xlu0 %v829, 126
        %v862 = vpop.permute.xlu0 %861
        %863 = vrot.lane.b32.xlu0 %v830, 126
        %v864 = vpop.permute.xlu0 %863
        %865 = vrot.lane.b32.xlu0 %v831, 126
        %v866 = vpop.permute.xlu0 %865
        %867 = vrot.lane.b32.xlu0 %v832, 126
        %v868 = vpop.permute.xlu0 %867
        %vm869 = vcmask 1031168
        %v870 = vsel %vm869, %v846, %v848
        %v871 = vsel %vm869, %v848, %v850
        %v872 = vsel %vm869, %v852, %v854
        %v873 = vsel %vm869, %v854, %v856
        %v874 = vsel %vm869, %v858, %v860
        %v875 = vsel %vm869, %v860, %v862
        %v876 = vsel %vm869, %v864, %v866
        %v877 = vsel %vm869, %v866, %v868
        %v886 = vadd.f32 %v797, %v870
        %v887 = vadd.f32 %v798, %v871
        %v888 = vadd.f32 %v799, %v872
        %v889 = vadd.f32 %v800, %v873
        %v890 = vadd.f32 %v801, %v874
        %v891 = vadd.f32 %v802, %v875
        %v892 = vadd.f32 %v803, %v876
        %v893 = vadd.f32 %v804, %v877
        %s894 = sld [smem:[#allocation4]]
        %vm895 = vcmp.ge.f32.partialorder %v886, 0.0
        %vm896 = vcmp.ge.f32.partialorder %v887, 0.0
        %vm897 = vcmp.ge.f32.partialorder %v888, 0.0
        %vm898 = vcmp.ge.f32.partialorder %v889, 0.0
        %vm899 = vcmp.ge.f32.partialorder %v890, 0.0
        %vm900 = vcmp.ge.f32.partialorder %v891, 0.0
        %vm901 = vcmp.ge.f32.partialorder %v892, 0.0
        %vm902 = vcmp.ge.f32.partialorder %v893, 0.0
        %v903 = vstv %s894
        %v904 = vmul.f32 %v903, %v886
        %v905 = vmul.f32 %v903, %v887
        %v906 = vmul.f32 %v903, %v888
        %v907 = vmul.f32 %v903, %v889
        %v908 = vmul.f32 %v903, %v890
        %v909 = vmul.f32 %v903, %v891
        %v910 = vmul.f32 %v903, %v892
        %v911 = vmul.f32 %v903, %v893
        %v912 = vsel %vm895, %v886, %v904
        %v913 = vsel %vm896, %v887, %v905
        %v914 = vsel %vm897, %v888, %v906
        %v915 = vsel %vm898, %v889, %v907
        %v916 = vsel %vm899, %v890, %v908
        %v917 = vsel %vm900, %v891, %v909
        %v918 = vsel %vm901, %v892, %v910
        %v919 = vsel %vm902, %v893, %v911
        %v920 = vld [vmem:[%s7] sm:$0xff]
        %v921 = vld [vmem:[%s7 + $0x8] sm:$0xff]
        %v922 = vld [vmem:[%s7 + $0x10] sm:$0xff]
        %v923 = vld [vmem:[%s7 + $0x18] sm:$0xff]
        %v924 = vld [vmem:[%s8] sm:$0xff]
        %v925 = vld [vmem:[%s8 + $0x8] sm:$0xff]
        %v926 = vld [vmem:[%s8 + $0x10] sm:$0xff]
        %v927 = vld [vmem:[%s8 + $0x18] sm:$0xff]
        %v928 = vadd.f32 %v912, %v913
        %v929 = vadd.f32 %v928, %v914
        %v930 = vadd.f32 %v929, %v915
        %v931 = vadd.f32 %v930, %v916
        %v932 = vadd.f32 %v931, %v917
        %v933 = vadd.f32 %v932, %v918
        %v934 = vadd.f32 %v933, %v919
        %935 = vadd.xlane.f32.xlu0 %v934
        %v936 = vpop.xlane.xlu0 %935
        %v937 = vrot.slane %v936, 4
        %v938 = vadd.f32 %v936, %v937
        %v939 = vrot.slane %v938, 2
        %v940 = vadd.f32 %v938, %v939
        %v941 = vrot.slane %v940, 1
        %v942 = vadd.f32 %v940, %v941
        %s943 = vtos %v942
        %v944 = vmul.f32 %v912, %v912
        %v945 = vmul.f32 %v913, %v913
        %v946 = vmul.f32 %v914, %v914
        %v947 = vmul.f32 %v915, %v915
        %v948 = vmul.f32 %v916, %v916
        %v949 = vmul.f32 %v917, %v917
        %v950 = vmul.f32 %v918, %v918
        %v951 = vmul.f32 %v919, %v919
        %v952 = vadd.f32 %v944, %v945
        %v953 = vadd.f32 %v952, %v946
        %v954 = vadd.f32 %v953, %v947
        %v955 = vadd.f32 %v954, %v948
        %v956 = vadd.f32 %v955, %v949
        %v957 = vadd.f32 %v956, %v950
        %v958 = vadd.f32 %v957, %v951
        %959 = vadd.xlane.f32.xlu0 %v958
        %v960 = vpop.xlane.xlu0 %959
        %v961 = vrot.slane %v960, 4
        %v962 = vadd.f32 %v960, %v961
        %v963 = vrot.slane %v962, 2
        %v964 = vadd.f32 %v962, %v963
        %v965 = vrot.slane %v964, 1
        %v966 = vadd.f32 %v964, %v965
        %s967 = vtos %v966
        %s968 = smul.f32 %s943, 0.00012207031
        %s969 = smul.f32 %s967, 0.00012207031
        %s970 = smul.f32 %s968, %s968
        %s971 = ssub.f32 %s969, %s970
        %s972 = smax.f32 %s971, 0.0
        %s973 = sadd.f32 %s972, 1e-08
        %v974 = vstv %s973
        %v975 = vrsqrt.pop %v974
        %v976 = vmul.f32 %v975, %v974
        %v977 = vmul.f32 %v976, %v975
        %v978 = vmul.f32 0.5, %v977
        %v979 = vsub.f32 1.5, %v978
        %v980 = vmul.f32 %v975, %v979
        %vm981 = vweird.f32 %v974
        %vm982 = vweird.f32 %v975
        %vm983 = vmor %vm981, %vm982
        %v984 = vsel %vm983, %v975, %v980
        %s985 = vtos %v984
        %v986 = vstv %s985
        %v987 = vmul.f32 %v920, %v986
        %v988 = vmul.f32 %v921, %v986
        %v989 = vmul.f32 %v922, %v986
        %v990 = vmul.f32 %v923, %v986
        %v991 = vstv %s968
        %v992 = vmul.f32 %v991, %v987
        %v993 = vmul.f32 %v991, %v988
        %v994 = vmul.f32 %v991, %v989
        %v995 = vmul.f32 %v991, %v990
        %v996 = vsub.f32 %v924, %v992
        %v997 = vsub.f32 %v925, %v993
        %v998 = vsub.f32 %v926, %v994
        %v999 = vsub.f32 %v927, %v995
        %1001 = vset.pattern.permute.xlu0 0
        %1002 = vperm.xlu0 %1001, %v987
        %v1003 = vpop.permute.xlu0 %1002
        %1006 = vset.pattern.permute.xlu0 0
        %1007 = vperm.xlu0 %1006, %v988
        %v1008 = vpop.permute.xlu0 %1007
        %1011 = vset.pattern.permute.xlu0 0
        %1012 = vperm.xlu0 %1011, %v989
        %v1013 = vpop.permute.xlu0 %1012
        %1016 = vset.pattern.permute.xlu0 0
        %1017 = vperm.xlu0 %1016, %v990
        %v1018 = vpop.permute.xlu0 %1017
        %v1020 = vmul.f32 %v912, %v1003
        %v1021 = vmul.f32 %v913, %v1003
        %v1022 = vmul.f32 %v914, %v1008
        %v1023 = vmul.f32 %v915, %v1008
        %v1024 = vmul.f32 %v916, %v1013
        %v1025 = vmul.f32 %v917, %v1013
        %v1026 = vmul.f32 %v918, %v1018
        %v1027 = vmul.f32 %v919, %v1018
        %1029 = vset.pattern.permute.xlu0 0
        %1030 = vperm.xlu0 %1029, %v996
        %v1031 = vpop.permute.xlu0 %1030
        %1034 = vset.pattern.permute.xlu0 0
        %1035 = vperm.xlu0 %1034, %v997
        %v1036 = vpop.permute.xlu0 %1035
        %1039 = vset.pattern.permute.xlu0 0
        %1040 = vperm.xlu0 %1039, %v998
        %v1041 = vpop.permute.xlu0 %1040
        %1044 = vset.pattern.permute.xlu0 0
        %1045 = vperm.xlu0 %1044, %v999
        %v1046 = vpop.permute.xlu0 %1045
        %v1048 = vadd.f32 %v1020, %v1031
        %v1049 = vadd.f32 %v1021, %v1031
        %v1050 = vadd.f32 %v1022, %v1036
        %v1051 = vadd.f32 %v1023, %v1036
        %v1052 = vadd.f32 %v1024, %v1041
        %v1053 = vadd.f32 %v1025, %v1041
        %v1054 = vadd.f32 %v1026, %v1046
        %v1055 = vadd.f32 %v1027, %v1046
        %v1056 = vld [vmem:[%s9] sm:$0xff]
        %v1057 = vld [vmem:[%s9 + $0x8] sm:$0xff]
        %vm1058 = vcmask 261120
        %v1060 = vsel %vm1058, %v1056, 0
        %v1063 = vsel %vm1058, %v1057, 0
        %1065 = vmatpush.msra.mxu0 0.0
        %1066 = vmatpush.msra.mxu0 0.0
        %1067 = vmatpush.msra.mxu0 0.0
        %1068 = vmatpush.msra.mxu0 0.0
        %1069 = vmatpush.msra.mxu0 0.0
        %1070 = vmatpush.msra.mxu0 0.0
        %1071 = vmatpush.msra.mxu0 0.0
        %1072 = vmatpush.msra.mxu0 0.0
        %1073 = vmatpush.msra.mxu0 0.0
        %1074 = vmatpush.msra.mxu0 0.0
        %1075 = vmatpush.msra.mxu0 0.0
        %1076 = vmatpush.msra.mxu0 0.0
        %1077 = vmatpush.msra.mxu0 %v1054
        %1078 = vmatpush.msra.mxu0 %v1052
        %1079 = vmatpush.msra.mxu0 %v1050
        %1080 = vmatpush.msra.mxu0 %v1048
        %1081 = vmatmul.f32.gmra.mxu0 %v1060
        %v1082 = vpop.f32.mrf.mxu0
        %v1083 = vadd.f32 %v360, %v1082
        %1084 = vmatmul.f32.gmra.mxu0 %v1063
        %v1085 = vpop.f32.mrf.mxu0
        %v1086 = vadd.f32 %v362, %v1085
        %1087 = vdwg.mxu0
        %1088 = vmatpush.msra.mxu0 0.0
        %1089 = vmatpush.msra.mxu0 0.0
        %1090 = vmatpush.msra.mxu0 0.0
        %1091 = vmatpush.msra.mxu0 0.0
        %1092 = vmatpush.msra.mxu0 0.0
        %1093 = vmatpush.msra.mxu0 0.0
        %1094 = vmatpush.msra.mxu0 0.0
        %1095 = vmatpush.msra.mxu0 0.0
        %1096 = vmatpush.msra.mxu0 0.0
        %1097 = vmatpush.msra.mxu0 0.0
        %1098 = vmatpush.msra.mxu0 0.0
        %1099 = vmatpush.msra.mxu0 0.0
        %1100 = vmatpush.msra.mxu0 %v1055
        %1101 = vmatpush.msra.mxu0 %v1053
        %1102 = vmatpush.msra.mxu0 %v1051
        %1103 = vmatpush.msra.mxu0 %v1049
        %1104 = vmatmul.f32.gmra.mxu0 %v1060
        %v1105 = vpop.f32.mrf.mxu0
        %v1106 = vadd.f32 %v361, %v1105
        %1107 = vmatmul.f32.gmra.mxu0 %v1063
        %v1108 = vpop.f32.mrf.mxu0
        %v1109 = vadd.f32 %v363, %v1108
        %1110 = vdwg.mxu0
        %1111 = vst [vmem:[%s354] sm:$0xff] %v1083
        %1112 = vst [vmem:[%s354 + $0x8] sm:$0xff] %v1106
        %1113 = vst [vmem:[%s354 + $0x10] sm:$0xff] %v1086
        %1114 = vst [vmem:[%s354 + $0x18] sm:$0xff] %v1109
        %s1115 = sand.u32 %s249, 1
        %s1116 = scalar_lea.sflag [#allocation6], %s1115
        %s1117 = sand.u32 %s249, 1
        %s1118 = smul.addr %s1117, 32
        %s1119 = scalar_lea.vmem [#allocation5], %s1118
        // Predicated region
        $region61: #{tpu_custom_call.1} parent=59 // pred_check
          %p1120 = pneg %p259
        $region62: #{tpu_custom_call.1} parent=59 // pred_check_branch
          %1122 = sbr.rel (%p1120) target = $region64
        $region63: #{tpu_custom_call.1} parent=59 // pred_region
          %1124 = vsyncadd %s1116, 0
          %s1125 = smul.addr %s26, 4
          %s1126 = smul.addr %s1125, 8
          %s1127 = scalar_lea.hbm %s10, %s1126
          %s1128 = sshll.u32 %s1119, 4
          %s1129 = int_to_ptr.vmem [resolvable:$true] %s1128
          %s1130 = sshll.u32 %s1127, 4
          %s1131 = int_to_ptr.hbm [resolvable:$true] %s1130
          %1136 = dma.vmem_to_hbm [thread:$0]  %s1129, 512, %s1131, %s1116, 256, 256, 16
        $region64: #{tpu_custom_call.1} parent=59 // pred_fallthru
          _
      $region60: #{tpu_custom_call.1} parent=5 // pred_fallthru
        _
      %p1137 = scmp.le.s32.totalorder 2, %s21
      // Predicated region
      $region65: #{tpu_custom_call.1} parent=5 // pred_check
        %p1138 = pneg %p1137
      $region66: #{tpu_custom_call.1} parent=5 // pred_check_branch
        %1140 = sbr.rel (%p1138) target = $region68
      $region67: #{tpu_custom_call.1} parent=5 // pred_region
        %s1141 = ssub.s32 %s21, 2
        // Predicated region
        $region69: #{tpu_custom_call.1} parent=67 // pred_check
          %p1142 = pneg %p265
        $region70: #{tpu_custom_call.1} parent=67 // pred_check_branch
          %1144 = sbr.rel (%p1142) target = $region72
        $region71: #{tpu_custom_call.1} parent=67 // pred_region
          %s1145 = sand.u32 %s250, 1
          %s1146 = scalar_lea.sflag [#allocation6], %s1145
          %s1147 = sand.u32 %s250, 1
          %s1148 = smul.addr %s1147, 32
          %s1149 = scalar_lea.vmem [#allocation5], %s1148
          %1151 = dma.done %s1146, 512
        $region72: #{tpu_custom_call.1} parent=67 // pred_fallthru
          _
      $region68: #{tpu_custom_call.1} parent=5 // pred_fallthru
        _
    $region6: #{tpu_custom_call.1} parent=1 // loop_footer
      %s25 = sadd.s32 1, %s21
    $region7: #{tpu_custom_call.1} parent=1 // loop_footer_branch
      %20 = sbr.rel target = $region3
    $region8: #{tpu_custom_call.1} parent=1 // loop_exit
      _
    %1152 = vsyncpa [#allocation6], 1
    %s1153 = scalar_lea.sflag [#allocation6], 1
    %1154 = vsyncpa %s1153, 1

</llo_original>
